<compile_context>
chip_gen: v7x
topology: tpu7x:2x2x1
jax: 0.10.0
libtpu: 0.0.40
codegen_flags: <defaults>
</compile_context>

<pallas_src>
import functools
import math

import numpy as np

import jax
import jax.numpy as jnp
from jax import lax
from jax.experimental import pallas as pl
from jax.experimental.pallas import tpu as pltpu

LOG2 = math.log(2.0)


def _softplus(x):
    return jax.nn.softplus(x)


def _shifted_softplus(x):
    return jax.nn.softplus(x) - jnp.float32(LOG2)


def _round_up(n, m):
    return ((n + m - 1) // m) * m


def _vmem_limit_bytes():
    """~75% of this generation's physical VMEM (v5e/v6e: 128 MiB, v7x: 64 MiB)."""
    try:
        cap = int(pltpu.get_tpu_info().vmem_capacity_bytes)
    except Exception:  # pragma: no cover - older runtimes / CPU tracing
        cap = 128 * 1024 * 1024
    return cap * 3 // 4


# ----------------------------------------------------------------------------
# Kernel 1: pair side.  Inputs are the already-activated, already-gathered
# x[idx_j] rows (sorted by idx_i) -> x_j_mod = softplus(x_j @ Wj + bj) * (f_ij @ G^T)
# ----------------------------------------------------------------------------
def pair_kernel(xj_ref, fij_ref, Gt_ref, Wj_ref, bj_ref, xjmod_ref):
    x_j_prime = _softplus(
        jnp.dot(xj_ref[...], Wj_ref[...], preferred_element_type=jnp.float32)
        + bj_ref[...])
    f_ij_prime = jnp.dot(fij_ref[...], Gt_ref[...],
                         preferred_element_type=jnp.float32)   # AttentionMask
    xjmod_ref[...] = x_j_prime * f_ij_prime


# ----------------------------------------------------------------------------
# Kernel 2: atom side.  Segment-sum of x_j_mod over the (sorted) pair tiles that
# belong to this atom tile, then residual stacks + output head.
# ----------------------------------------------------------------------------
def atom_kernel(ts_ref, cnt_ref,                      # scalar prefetch (SMEM)
                xact_ref, xjmod_ref, idxi_ref,
                Wi_ref, bi_ref, Wv_ref, bv_ref,
                rw1_ref, rb1_ref, rw2_ref, rb2_ref,
                Wout_ref, bout_ref,
                pred_ref, vout_ref, acc_ref, *, unroll_res):
    i = pl.program_id(0)
    p = pl.program_id(1)
    tn = acc_ref.shape[0]
    tp = xjmod_ref.shape[0]

    @pl.when(p == 0)
    def _():
        acc_ref[...] = jnp.zeros_like(acc_ref)

    # Pairs are sorted by idx_i, so atom tile i only ever needs pair tiles in
    # [ts[i], ts[i] + cnt[i]); skip the (clamped) revisits beyond that range.
    @pl.when(p < cnt_ref[i])
    def _():
        idx_i = idxi_ref[...]                                          # (1, TP)
        local = lax.broadcasted_iota(jnp.int32, (tn, tp), 0) + i * tn  # global atom id
        sel = (local == idx_i).astype(jnp.float32)                     # (TN, TP)
        acc_ref[...] += jnp.dot(sel, xjmod_ref[...],
                                preferred_element_type=jnp.float32)

    @pl.when(p == pl.num_programs(1) - 1)
    def _():
        # interaction_i branch (embedding already shifted-softplus-activated)
        x_i_prime = _softplus(
            jnp.dot(xact_ref[...], Wi_ref[...],
                    preferred_element_type=jnp.float32) + bi_ref[...])
        v = x_i_prime + acc_ref[...]

        def residual(k, h):  # PhysNetResidual (dynamic first-axis weight index)
            r = _softplus(
                jnp.dot(h, rw1_ref[k], preferred_element_type=jnp.float32)
                + rb1_ref[k])
            return h + jnp.dot(r, rw2_ref[k],
                               preferred_element_type=jnp.float32) + rb2_ref[k]

        v = lax.fori_loop(0, 3, residual, v, unroll=unroll_res)   # interaction residuals
        v = jnp.dot(_softplus(v), Wv_ref[...],
                    preferred_element_type=jnp.float32) + bv_ref[...]   # process_v
        v = lax.fori_loop(3, 6, residual, v, unroll=unroll_res)   # module-level residuals
        vout_ref[...] = v

        vr = residual(6, v)                                       # PhysNetOutput residual
        pred_ref[...] = _shifted_softplus(
            jnp.dot(vr, Wout_ref[...], preferred_element_type=jnp.float32)
            + bout_ref[...])


# ----------------------------------------------------------------------------
# Wrapper
# ----------------------------------------------------------------------------
def physnet_module_forward(params, atomic_embedding, f_ij, pair_indices,
                           *, atom_tile=256, pair_tile=256):
    N, F = atomic_embedding.shape
    P, R = f_ij.shape
    f32 = jnp.float32

    idx_i = pair_indices[0].astype(jnp.int32)
    idx_j = pair_indices[1].astype(jnp.int32)

    # ---- wrapper preprocessing (review items 1-3) --------------------------
    # Activation applied once per atom (not per pair); pairs sorted by the
    # destination atom so kernel 2 walks contiguous pair ranges per atom tile.
    x_act = _shifted_softplus(atomic_embedding.astype(f32))          # (N, F)
    order = jnp.argsort(idx_i)
    idx_i_s = idx_i[order]
    idx_j_s = idx_j[order]
    f_ij_s = f_ij[order].astype(f32)
    x_j = x_act[idx_j_s]                                             # (P, F) gather
    # TODO(synk): move this gather in-kernel (DMA gather keyed on idx_j) to fuse
    #             it with the Wj matmul of kernel 1.

    Fp = _round_up(F, 128)          # lane-dense feature dim
    Np = _round_up(N, atom_tile)
    Pp = _round_up(P, pair_tile)
    OUTP = 128                      # lane-dense slab for the 2 atomic properties
    nres = params["rw1"].shape[0]
    nprop = params["Wout"].shape[1]
    nat = Np // atom_tile
    npt = Pp // pair_tile

    def pad(x, shape):
        out = jnp.zeros(shape, f32)
        sl = tuple(slice(0, s) for s in x.shape)
        return out.at[sl].set(x.astype(f32))

    xact_p = pad(x_act, (Np, Fp))
    xj_p = pad(x_j, (Pp, Fp))
    fij_p = pad(f_ij_s, (Pp, R))    # zero rows -> padded pairs contribute exactly 0
    # padded pairs get idx_i == Np so they can never match a real atom row either
    idxi_p = jnp.full((1, Pp), Np, jnp.int32).at[0, :P].set(idx_i_s)

    Gt = pad(params["Gt"], (R, Fp))
    Wi = pad(params["Wi"], (Fp, Fp)); bi = pad(params["bi"], (1, Fp))
    Wj = pad(params["Wj"], (Fp, Fp)); bj = pad(params["bj"], (1, Fp))
    Wv = pad(params["Wv"], (Fp, Fp)); bv = pad(params["bv"], (1, Fp))
    rw1 = pad(params["rw1"], (nres, Fp, Fp)); rb1 = pad(params["rb1"], (nres, 1, Fp))
    rw2 = pad(params["rw2"], (nres, Fp, Fp)); rb2 = pad(params["rb2"], (nres, 1, Fp))
    Wout = pad(params["Wout"], (Fp, OUTP));   bout = pad(params["bout"], (1, OUTP))

    # ---- per-atom-tile pair-tile ranges (host side; grid must be static) ----
    # In production these offsets would be computed on device with a static
    # npt_max upper bound; here we derive them concretely for the demo.
    idx_np = np.asarray(jax.device_get(idx_i_s))
    bounds = np.arange(nat + 1, dtype=np.int64) * atom_tile
    starts = np.searchsorted(idx_np, bounds[:-1], side="left")
    ends = np.searchsorted(idx_np, bounds[1:], side="left")
    tile_lo = starts // pair_tile
    tile_hi = -(-ends // pair_tile)                                  # ceil div
    cnt = np.where(ends > starts, tile_hi - tile_lo, 0).astype(np.int32)
    tile_lo = np.minimum(tile_lo, npt - 1).astype(np.int32)
    npt_max = max(int(cnt.max()), 1)

    tile_start = jnp.asarray(tile_lo)                                # (nat,) int32
    tile_count = jnp.asarray(cnt)                                    # (nat,) int32

    vmem_cap = _vmem_limit_bytes()

    # ---- kernel 1: pair side (grid "parallel" over pair tiles) -------------
    k1_cost = pl.CostEstimate(
        flops=2 * Pp * (Fp * Fp + R * Fp),
        transcendentals=Pp * Fp,
        bytes_accessed=4 * (Pp * (2 * Fp + R) + Fp * Fp + R * Fp + Fp),
    )
    x_j_mod = pl.pallas_call(
        pair_kernel,
        out_shape=jax.ShapeDtypeStruct((Pp, Fp), f32),
        grid=(npt,),
        in_specs=[
            pl.BlockSpec((pair_tile, Fp), lambda p: (p, 0)),     # gathered x_j tile
            pl.BlockSpec((pair_tile, R), lambda p: (p, 0)),      # f_ij tile
            pl.BlockSpec((R, Fp), lambda p: (0, 0)),             # G^T (resident)
            pl.BlockSpec((Fp, Fp), lambda p: (0, 0)),            # Wj  (resident)
            pl.BlockSpec((1, Fp), lambda p: (0, 0)),             # bj  (resident)
        ],
        out_specs=pl.BlockSpec((pair_tile, Fp), lambda p: (p, 0)),
        compiler_params=pltpu.CompilerParams(
            dimension_semantics=("parallel",),
            vmem_limit_bytes=vmem_cap),
        cost_estimate=k1_cost,
    )(xj_p, fij_p, Gt, Wj, bj)

    # ---- kernel 2: atom side (sorted-pair segment sum + residual stacks) ----
    def pair_block(i, p, ts, cnt_ref):
        # Clamped pair-tile index for atom tile i, step p (stays in range even
        # when this atom tile owns fewer than npt_max pair tiles).
        return ts[i] + jnp.minimum(p, jnp.maximum(cnt_ref[i] - 1, 0))

    k2_cost = pl.CostEstimate(
        flops=2 * (nat * npt_max * atom_tile * pair_tile * Fp
                   + Np * (2 * nres + 2) * Fp * Fp + Np * Fp * OUTP),
        transcendentals=Np * Fp * (nres + 2) + Np * OUTP,
        bytes_accessed=4 * (nat * npt_max * pair_tile * (Fp + 1)
                            + Np * (2 * Fp + OUTP) + (2 * nres + 3) * Fp * Fp),
    )
    kernel2 = functools.partial(atom_kernel, unroll_res=(atom_tile <= 128))
    pred_p, v_p = pl.pallas_call(
        kernel2,
        out_shape=(jax.ShapeDtypeStruct((Np, OUTP), f32),
                   jax.ShapeDtypeStruct((Np, Fp), f32)),
        grid_spec=pltpu.PrefetchScalarGridSpec(
            num_scalar_prefetch=2,
            grid=(nat, npt_max),
            in_specs=[
                pl.BlockSpec((atom_tile, Fp), lambda i, p, ts, cn: (i, 0)),      # x_act tile
                pl.BlockSpec((pair_tile, Fp),
                             lambda i, p, ts, cn: (pair_block(i, p, ts, cn), 0)),  # x_j_mod
                pl.BlockSpec((1, pair_tile),
                             lambda i, p, ts, cn: (0, pair_block(i, p, ts, cn))),  # idx_i
                pl.BlockSpec((Fp, Fp), lambda i, p, ts, cn: (0, 0)),             # Wi
                pl.BlockSpec((1, Fp), lambda i, p, ts, cn: (0, 0)),              # bi
                pl.BlockSpec((Fp, Fp), lambda i, p, ts, cn: (0, 0)),             # Wv
                pl.BlockSpec((1, Fp), lambda i, p, ts, cn: (0, 0)),              # bv
                pl.BlockSpec((nres, Fp, Fp), lambda i, p, ts, cn: (0, 0, 0)),    # rw1
                pl.BlockSpec((nres, 1, Fp), lambda i, p, ts, cn: (0, 0, 0)),     # rb1
                pl.BlockSpec((nres, Fp, Fp), lambda i, p, ts, cn: (0, 0, 0)),    # rw2
                pl.BlockSpec((nres, 1, Fp), lambda i, p, ts, cn: (0, 0, 0)),     # rb2
                pl.BlockSpec((Fp, OUTP), lambda i, p, ts, cn: (0, 0)),           # Wout
                pl.BlockSpec((1, OUTP), lambda i, p, ts, cn: (0, 0)),            # bout
            ],
            out_specs=(
                pl.BlockSpec((atom_tile, OUTP), lambda i, p, ts, cn: (i, 0)),
                pl.BlockSpec((atom_tile, Fp), lambda i, p, ts, cn: (i, 0)),
            ),
            scratch_shapes=[pltpu.VMEM((atom_tile, Fp), f32)],
        ),
        compiler_params=pltpu.CompilerParams(
            dimension_semantics=("parallel", "arbitrary"),
            vmem_limit_bytes=vmem_cap),
        cost_estimate=k2_cost,
    )(tile_start, tile_count, xact_p, x_j_mod, idxi_p,
      Wi, bi, Wv, bv, rw1, rb1, rw2, rb2, Wout, bout)

    return {"prediction": pred_p[:N, :nprop],
            "updated_embedding": v_p[:N, :F]}


# ----------------------------------------------------------------------------
# Pure-JAX reference (unpadded, unsorted) for validation
# ----------------------------------------------------------------------------
def physnet_module_reference(params, atomic_embedding, f_ij, pair_indices):
    N, F = atomic_embedding.shape
    idx_i, idx_j = pair_indices[0], pair_indices[1]

    x = _shifted_softplus(atomic_embedding)
    x_j = x[idx_j]
    x_i_prime = _softplus(x @ params["Wi"] + params["bi"])
    x_j_prime = _softplus(x_j @ params["Wj"] + params["bj"])
    f_ij_prime = f_ij @ params["Gt"]
    x_j_mod = x_j_prime * f_ij_prime
    summed = jnp.zeros((N, F), jnp.float32).at[idx_i].add(x_j_mod)
    v = x_i_prime + summed

    def residual(h, k):
        r = _softplus(h @ params["rw1"][k] + params["rb1"][k])
        return h + r @ params["rw2"][k] + params["rb2"][k]

    for k in range(3):
        v = residual(v, k)
    v = _softplus(v) @ params["Wv"] + params["bv"]
    for k in range(3, 6):
        v = residual(v, k)
    vr = residual(v, 6)
    pred = _shifted_softplus(vr @ params["Wout"] + params["bout"])
    return {"prediction": pred, "updated_embedding": v}


# ----------------------------------------------------------------------------
# Deterministic parameter init (matches nn.Module shapes, weights pre-transposed)
# ----------------------------------------------------------------------------
def init_params(key, F, R, n_residual_total=7, n_props=2):
    ks = jax.random.split(key, 12)
    s = 0.1
    return {
        "Gt": s * jax.random.normal(ks[0], (R, F), jnp.float32),     # AttentionMask G^T
        "Wi": s * jax.random.normal(ks[1], (F, F), jnp.float32),
        "bi": s * jax.random.normal(ks[2], (1, F), jnp.float32),
        "Wj": s * jax.random.normal(ks[3], (F, F), jnp.float32),
        "bj": s * jax.random.normal(ks[4], (1, F), jnp.float32),
        "Wv": s * jax.random.normal(ks[5], (F, F), jnp.float32),
        "bv": s * jax.random.normal(ks[6], (1, F), jnp.float32),
        # 7 residual blocks: 3 interaction + 3 module-level + 1 inside output
        "rw1": s * jax.random.normal(ks[7], (n_residual_total, F, F), jnp.float32),
        "rb1": s * jax.random.normal(ks[8], (n_residual_total, 1, F), jnp.float32),
        "rw2": s * jax.random.normal(ks[9], (n_residual_total, F, F), jnp.float32),
        "rb2": s * jax.random.normal(ks[10], (n_residual_total, 1, F), jnp.float32),
        "Wout": s * jax.random.normal(ks[11], (F, n_props), jnp.float32),
        "bout": jnp.zeros((1, n_props), jnp.float32),
    }


if __name__ == "__main__":
    F = 64     # number_of_atom_features (module default)
    R = 16     # number_of_radial_basis_functions
    N = 300    # num_atoms  -> 2 atom tiles of 256 after padding (both TCs busy)
    P = 1200   # num_pairs  -> 5 pair tiles of 256 after padding

    key = jax.random.PRNGKey(0)
    k_emb, k_fij, k_i, k_j, k_par = jax.random.split(key, 5)

    atomic_embedding = jax.random.normal(k_emb, (N, F), jnp.float32)
    f_ij = jax.random.uniform(k_fij, (P, R), jnp.float32)
    idx_i = jax.random.randint(k_i, (P,), 0, N, jnp.int32)
    idx_j = jax.random.randint(k_j, (P,), 0, N, jnp.int32)
    pair_indices = jnp.stack([idx_i, idx_j], axis=0)  # (2, P)

    params = init_params(k_par, F, R)

    out = physnet_module_forward(params, atomic_embedding, f_ij, pair_indices)
    jax.block_until_ready(out)

    ref = physnet_module_reference(params, atomic_embedding, f_ij, pair_indices)
    assert out["prediction"].shape == (N, 2)
    assert out["updated_embedding"].shape == (N, F)
    assert jnp.allclose(out["prediction"], ref["prediction"], atol=5e-4, rtol=5e-4)
    assert jnp.allclose(out["updated_embedding"], ref["updated_embedding"],
                        atol=5e-4, rtol=5e-4)

    print("KERNEL_OK")
</pallas_src>

<mosaic_0001>
module attributes {stable_mosaic.version = 11 : i64} {
  func.func @pair_kernel(%arg0: i32, %arg1: memref<256x128xf32, #tpu.memory_space<vmem>>, %arg2: memref<256x16xf32, #tpu.memory_space<vmem>>, %arg3: memref<16x128xf32, #tpu.memory_space<vmem>>, %arg4: memref<128x128xf32, #tpu.memory_space<vmem>>, %arg5: memref<1x128xf32, #tpu.memory_space<vmem>>, %arg6: memref<256x128xf32, #tpu.memory_space<vmem>>) attributes {dimension_semantics = [#tpu.dimension_semantics<parallel>], iteration_bounds = array<i64: 5>, scalar_prefetch = 0 : i64, scratch_operands = 0 : i64, tpu.core_type = #tpu.core_type<tc>, window_params = [{transform_indices = @transform_0, window_bounds = array<i64: 256, 128>}, {transform_indices = @transform_1, window_bounds = array<i64: 256, 16>}, {pipeline_mode = #tpu.pipeline_mode<synchronous>, transform_indices = @transform_2, window_bounds = array<i64: 16, 128>}, {pipeline_mode = #tpu.pipeline_mode<synchronous>, transform_indices = @transform_3, window_bounds = array<i64: 128, 128>}, {pipeline_mode = #tpu.pipeline_mode<synchronous>, transform_indices = @transform_4, window_bounds = array<i64: 1, 128>}, {transform_indices = @transform_5, window_bounds = array<i64: 256, 128>}]} {
    %c0 = arith.constant 0 : index
    %c0_0 = arith.constant 0 : index
    %0 = vector.load %arg1[%c0, %c0_0] : memref<256x128xf32, #tpu.memory_space<vmem>>, vector<256x128xf32>
    %c0_1 = arith.constant 0 : index
    %c0_2 = arith.constant 0 : index
    %1 = vector.load %arg4[%c0_1, %c0_2] : memref<128x128xf32, #tpu.memory_space<vmem>>, vector<128x128xf32>
    %cst = arith.constant dense<0.000000e+00> : vector<256x128xf32>
    %2 = tpu.matmul %0, %1, %cst {dimension_numbers = #tpu.dot_dimension_numbers<[1], [0], [0], [1], [0, 0, 1, 1], [], []>} : vector<256x128xf32>, vector<128x128xf32>, vector<256x128xf32> -> vector<256x128xf32>
    %c0_3 = arith.constant 0 : index
    %c0_4 = arith.constant 0 : index
    %3 = vector.load %arg5[%c0_3, %c0_4] : memref<1x128xf32, #tpu.memory_space<vmem>>, vector<1x128xf32>
    %4 = vector.broadcast %3 : vector<1x128xf32> to vector<256x128xf32>
    %5 = arith.addf %2, %4 : vector<256x128xf32>
    %cst_5 = arith.constant 0.000000e+00 : f32
    %6 = vector.broadcast %cst_5 : f32 to vector<256x128xf32>
    %7 = arith.maximumf %5, %6 : vector<256x128xf32>
    %8 = vector.broadcast %cst_5 : f32 to vector<256x128xf32>
    %9 = arith.subf %5, %8 : vector<256x128xf32>
    %10 = arith.cmpf one, %9, %9 : vector<256x128xf32>
    %11 = vector.broadcast %cst_5 : f32 to vector<256x128xf32>
    %12 = arith.addf %5, %11 : vector<256x128xf32>
    %13 = math.absf %9 : vector<256x128xf32>
    %cst_6 = arith.constant 0.000000e+00 : f32
    %14 = vector.broadcast %cst_6 : f32 to vector<256x128xf32>
    %15 = arith.subf %14, %13 : vector<256x128xf32>
    %16 = math.exp %15 : vector<256x128xf32>
    %17 = math.log1p %16 : vector<256x128xf32>
    %18 = arith.addf %7, %17 : vector<256x128xf32>
    %19 = arith.select %10, %12, %18 : vector<256x128xi1>, vector<256x128xf32>
    %c0_7 = arith.constant 0 : index
    %c0_8 = arith.constant 0 : index
    %20 = vector.load %arg2[%c0_7, %c0_8] : memref<256x16xf32, #tpu.memory_space<vmem>>, vector<256x16xf32>
    %c0_9 = arith.constant 0 : index
    %c0_10 = arith.constant 0 : index
    %21 = vector.load %arg3[%c0_9, %c0_10] : memref<16x128xf32, #tpu.memory_space<vmem>>, vector<16x128xf32>
    %cst_11 = arith.constant dense<0.000000e+00> : vector<256x128xf32>
    %22 = tpu.matmul %20, %21, %cst_11 {dimension_numbers = #tpu.dot_dimension_numbers<[1], [0], [0], [1], [0, 0, 1, 1], [], []>} : vector<256x16xf32>, vector<16x128xf32>, vector<256x128xf32> -> vector<256x128xf32>
    %23 = arith.mulf %19, %22 : vector<256x128xf32>
    %c0_12 = arith.constant 0 : index
    %c0_13 = arith.constant 0 : index
    %24 = vector.load %arg6[%c0_12, %c0_13] : memref<256x128xf32, #tpu.memory_space<vmem>>, vector<256x128xf32>
    tpu.vector_store %arg6[%c0_12, %c0_13], %23 {strides = array<i32>} : memref<256x128xf32, #tpu.memory_space<vmem>>, vector<256x128xf32>,
    return
  }
  func.func @transform_0(%arg0: i32) -> (i32, i32) {
    %c0_i32 = arith.constant 0 : i32
    %c0_i32_0 = arith.constant 0 : i32
    return %arg0, %c0_i32 : i32, i32
  }
  func.func @transform_1(%arg0: i32) -> (i32, i32) {
    %c0_i32 = arith.constant 0 : i32
    %c0_i32_0 = arith.constant 0 : i32
    return %arg0, %c0_i32 : i32, i32
  }
  func.func @transform_2(%arg0: i32) -> (i32, i32) {
    %c0_i32 = arith.constant 0 : i32
    %c0_i32_0 = arith.constant 0 : i32
    %c0_i32_1 = arith.constant 0 : i32
    return %c0_i32, %c0_i32_0 : i32, i32
  }
  func.func @transform_3(%arg0: i32) -> (i32, i32) {
    %c0_i32 = arith.constant 0 : i32
    %c0_i32_0 = arith.constant 0 : i32
    %c0_i32_1 = arith.constant 0 : i32
    return %c0_i32, %c0_i32_0 : i32, i32
  }
  func.func @transform_4(%arg0: i32) -> (i32, i32) {
    %c0_i32 = arith.constant 0 : i32
    %c0_i32_0 = arith.constant 0 : i32
    %c0_i32_1 = arith.constant 0 : i32
    return %c0_i32, %c0_i32_0 : i32, i32
  }
  func.func @transform_5(%arg0: i32) -> (i32, i32) {
    %c0_i32 = arith.constant 0 : i32
    %c0_i32_0 = arith.constant 0 : i32
    return %arg0, %c0_i32 : i32, i32
  }
}

</mosaic_0001>

<llo_original>
// kernel: tpu_custom_call.1
$region0: #{tpu_custom_call.1}
  #allocation0 [shape = 'u32[]', space=smem, size = 0x4, offset = 0x4, fixed_abs, tag = 'smem constant byte address 0x4 - core index']
  #allocation1 [shape = 'u32[144,128]{1,0:T(1,128)}', space=vmem, size = 0x12000, scoped, tag = 'internal scratch']
  %s0 = inlined_call_operand.hbm [shape: f32[1280,128], index: 0, kind: input, shape index: {}]
  %s1 = inlined_call_operand.hbm [shape: f32[1280,16], index: 1, kind: input, shape index: {}]
  %s2 = inlined_call_operand.hbm [shape: f32[16,128], index: 2, kind: input, shape index: {}]
  %s3 = inlined_call_operand.hbm [shape: f32[128,128], index: 3, kind: input, shape index: {}]
  %s4 = inlined_call_operand.hbm [shape: f32[1,128], index: 4, kind: input, shape index: {}]
  %s5 = inlined_call_operand.hbm [shape: f32[1280,128], index: 5, kind: output, shape index: {}]
  %s6 = sld [smem:[#allocation0]]
  $region73: #{tpu_custom_call.1} parent=0
    _
  %s8 = ssub.s32 1, %s6
  %s9 = scalar_select 0, %s8, %s6
  $region1: #{tpu_custom_call.1} parent=0
    #allocation2 [shape = 'u8[262144]{0}', space=vmem, size = 0x40000, scoped, tag = 'input window, operand 0']
    #allocation3 [shape = 's32[2]{0}', space=sflag, size = 0x8, scoped, tag = 'scoped memory for tpu_custom_call.1']
    #allocation4 [shape = 's32[2]{0}', space=sflag, size = 0x8, scoped, tag = 'scoped memory for tpu_custom_call.1']
    #allocation5 [shape = 'u8[262144]{0}', space=vmem, size = 0x40000, scoped, tag = 'input window, operand 1']
    #allocation6 [shape = 's32[2]{0}', space=sflag, size = 0x8, scoped, tag = 'scoped memory for tpu_custom_call.1']
    #allocation7 [shape = 'u8[8192]{0}', space=vmem, size = 0x2000, scoped, tag = 'input window, operand 2, single buffered']
    #allocation8 [shape = 'u8[65536]{0}', space=vmem, size = 0x10000, scoped, tag = 'input window, operand 3, single buffered']
    #allocation9 [shape = 's32[1]{0}', space=sflag, size = 0x4, scoped, tag = 'scoped memory for tpu_custom_call.1']
    #allocation10 [shape = 'u8[512]{0}', space=vmem, size = 0x400, scoped, tag = 'input window, operand 4, single buffered']
    #allocation11 [shape = 'u8[262144]{0}', space=vmem, size = 0x40000, scoped, tag = 'output window, operand 0']
    %10 = vsyncpa [#allocation3], 0
    %s11 = scalar_lea.sflag [#allocation3], 1
    %12 = vsyncpa %s11, 0
    %13 = vsyncpa [#allocation6], 0
    %s14 = scalar_lea.sflag [#allocation6], 1
    %15 = vsyncpa %s14, 0
    %16 = vsyncpa [#allocation9], 0
    %17 = vsyncpa [#allocation4], 0
    %s18 = scalar_lea.sflag [#allocation4], 1
    %19 = vsyncpa %s18, 0
    loop: start=0, step=1, limit=7
    $region2: #{tpu_custom_call.1} parent=1 // loop_pre_header
      _
    $region3: #{tpu_custom_call.1} parent=1 // loop_header
      %s21 = sphi 0, %s25
      %p22 = scmp.ge.s32.totalorder %s21, 7
      %s31 = sphi 0, %s33
      %s34 = sphi 0, %s31
      %s35 = sphi 0, %s34
      %s51 = sphi 0, %s35
      %s57 = sphi 0, %s59
      %s60 = sphi 0, %s57
      %s61 = sphi 0, %s60
      %s77 = sphi 0, %s61
      %s81 = sphi 0, %s81
      %s83 = sphi 0, %s81
      %s84 = sphi 0, %s83
      %s98 = sphi 0, %s84
      %s102 = sphi 0, %s102
      %s104 = sphi 0, %s102
      %s105 = sphi 0, %s104
      %s119 = sphi 0, %s105
      %s123 = sphi 0, %s123
      %s125 = sphi 0, %s123
      %s126 = sphi 0, %s125
      %s140 = sphi 0, %s126
      %s146 = sphi 0, %s148
      %s149 = sphi 0, %s146
      %s150 = sphi 0, %s149
      %s166 = sphi 0, %s150
    $region4: #{tpu_custom_call.1} parent=1 // loop_header_branch
      %24 = sbr.rel (%p22) target = $region8
    $region5: #{tpu_custom_call.1} parent=1 // loop_body
      %s26 = ssub.s32 %s21, 1
      %s27 = ssub.s32 %s21, 2
      %s28 = sadd.s32 %s21, 1
      %s29 = ssub.s32 %s21, %s28
      %p30 = scmp.eq.s32.totalorder %s29, 0
      %s32 = sadd.s32 %s31, 1
      %s33 = scalar_select %p30, %s31, %s32
      %p36 = pneg %p30
      %p37 = scmp.eq.s32.totalorder %s21, 4
      %p38 = por %p36, %p37
      %p39 = scmp.ne.s32.totalorder %s31, %s34
      %p40 = scmp.eq.s32.totalorder %s21, 0
      %p41 = por %p39, %p40
      %p42 = scmp.ne.s32.totalorder %s31, %s34
      %p43 = scmp.eq.s32.totalorder %s26, 4
      %p44 = por %p42, %p43
      %p45 = scmp.ne.s32.totalorder %s34, %s35
      %p46 = scmp.eq.s32.totalorder %s26, 0
      %p47 = por %p45, %p46
      %p48 = scmp.ne.s32.totalorder %s34, %s35
      %p49 = scmp.eq.s32.totalorder %s27, 4
      %p50 = por %p48, %p49
      %p52 = scmp.ne.s32.totalorder %s35, %s51
      %p53 = scmp.eq.s32.totalorder %s27, 0
      %p54 = por %p52, %p53
      %s55 = ssub.s32 %s21, %s28
      %p56 = scmp.eq.s32.totalorder %s55, 0
      %s58 = sadd.s32 %s57, 1
      %s59 = scalar_select %p56, %s57, %s58
      %p62 = pneg %p56
      %p63 = scmp.eq.s32.totalorder %s21, 4
      %p64 = por %p62, %p63
      %p65 = scmp.ne.s32.totalorder %s57, %s60
      %p66 = scmp.eq.s32.totalorder %s21, 0
      %p67 = por %p65, %p66
      %p68 = scmp.ne.s32.totalorder %s57, %s60
      %p69 = scmp.eq.s32.totalorder %s26, 4
      %p70 = por %p68, %p69
      %p71 = scmp.ne.s32.totalorder %s60, %s61
      %p72 = scmp.eq.s32.totalorder %s26, 0
      %p73 = por %p71, %p72
      %p74 = scmp.ne.s32.totalorder %s60, %s61
      %p75 = scmp.eq.s32.totalorder %s27, 4
      %p76 = por %p74, %p75
      %p78 = scmp.ne.s32.totalorder %s61, %s77
      %p79 = scmp.eq.s32.totalorder %s27, 0
      %p80 = por %p78, %p79
      %s82 = sadd.s32 %s81, 1
      %p85 = scmp.eq.s32.totalorder %s21, 4
      %p86 = scmp.ne.s32.totalorder %s81, %s83
      %p87 = scmp.eq.s32.totalorder %s21, 0
      %p88 = por %p86, %p87
      %p89 = scmp.ne.s32.totalorder %s81, %s83
      %p90 = scmp.eq.s32.totalorder %s26, 4
      %p91 = por %p89, %p90
      %p92 = scmp.ne.s32.totalorder %s83, %s84
      %p93 = scmp.eq.s32.totalorder %s26, 0
      %p94 = por %p92, %p93
      %p95 = scmp.ne.s32.totalorder %s83, %s84
      %p96 = scmp.eq.s32.totalorder %s27, 4
      %p97 = por %p95, %p96
      %p99 = scmp.ne.s32.totalorder %s84, %s98
      %p100 = scmp.eq.s32.totalorder %s27, 0
      %p101 = por %p99, %p100
      %s103 = sadd.s32 %s102, 1
      %p106 = scmp.eq.s32.totalorder %s21, 4
      %p107 = scmp.ne.s32.totalorder %s102, %s104
      %p108 = scmp.eq.s32.totalorder %s21, 0
      %p109 = por %p107, %p108
      %p110 = scmp.ne.s32.totalorder %s102, %s104
      %p111 = scmp.eq.s32.totalorder %s26, 4
      %p112 = por %p110, %p111
      %p113 = scmp.ne.s32.totalorder %s104, %s105
      %p114 = scmp.eq.s32.totalorder %s26, 0
      %p115 = por %p113, %p114
      %p116 = scmp.ne.s32.totalorder %s104, %s105
      %p117 = scmp.eq.s32.totalorder %s27, 4
      %p118 = por %p116, %p117
      %p120 = scmp.ne.s32.totalorder %s105, %s119
      %p121 = scmp.eq.s32.totalorder %s27, 0
      %p122 = por %p120, %p121
      %s124 = sadd.s32 %s123, 1
      %p127 = scmp.eq.s32.totalorder %s21, 4
      %p128 = scmp.ne.s32.totalorder %s123, %s125
      %p129 = scmp.eq.s32.totalorder %s21, 0
      %p130 = por %p128, %p129
      %p131 = scmp.ne.s32.totalorder %s123, %s125
      %p132 = scmp.eq.s32.totalorder %s26, 4
      %p133 = por %p131, %p132
      %p134 = scmp.ne.s32.totalorder %s125, %s126
      %p135 = scmp.eq.s32.totalorder %s26, 0
      %p136 = por %p134, %p135
      %p137 = scmp.ne.s32.totalorder %s125, %s126
      %p138 = scmp.eq.s32.totalorder %s27, 4
      %p139 = por %p137, %p138
      %p141 = scmp.ne.s32.totalorder %s126, %s140
      %p142 = scmp.eq.s32.totalorder %s27, 0
      %p143 = por %p141, %p142
      %s144 = ssub.s32 %s21, %s28
      %p145 = scmp.eq.s32.totalorder %s144, 0
      %s147 = sadd.s32 %s146, 1
      %s148 = scalar_select %p145, %s146, %s147
      %p151 = pneg %p145
      %p152 = scmp.eq.s32.totalorder %s21, 4
      %p153 = por %p151, %p152
      %p154 = scmp.ne.s32.totalorder %s146, %s149
      %p155 = scmp.eq.s32.totalorder %s21, 0
      %p156 = por %p154, %p155
      %p157 = scmp.ne.s32.totalorder %s146, %s149
      %p158 = scmp.eq.s32.totalorder %s26, 4
      %p159 = por %p157, %p158
      %p160 = scmp.ne.s32.totalorder %s149, %s150
      %p161 = scmp.eq.s32.totalorder %s26, 0
      %p162 = por %p160, %p161
      %p163 = scmp.ne.s32.totalorder %s149, %s150
      %p164 = scmp.eq.s32.totalorder %s27, 4
      %p165 = por %p163, %p164
      %p167 = scmp.ne.s32.totalorder %s150, %s166
      %p168 = scmp.eq.s32.totalorder %s27, 0
      %p169 = por %p167, %p168
      %p170 = scmp.le.s32.totalorder 1, %s21
      %p171 = scmp.lt.s32.totalorder %s21, 6
      %p172 = pnand %p170, %p171
      %p173 = pneg %p172
      // Predicated region
      $region9: #{tpu_custom_call.1} parent=5 // pred_check
        _
      $region10: #{tpu_custom_call.1} parent=5 // pred_check_branch
        %175 = sbr.rel (%p172) target = $region12
      $region11: #{tpu_custom_call.1} parent=5 // pred_region
        %s176 = ssub.s32 %s21, 1
        // Predicated region
        $region13: #{tpu_custom_call.1} parent=11 // pred_check
          %p177 = pneg %p94
        $region14: #{tpu_custom_call.1} parent=11 // pred_check_branch
          %179 = sbr.rel (%p177) target = $region16
        $region15: #{tpu_custom_call.1} parent=11 // pred_region
          %s181 = ssub.s32 256, 256
          %182 = vsyncadd [#allocation6], %s181
          %s183 = sshll.u32 [#allocation7], 4
          %s184 = int_to_ptr.vmem [resolvable:$true] %s183
          %189 = dma.hbm_to_vmem [thread:$0]  %s2, 256, %s184, [#allocation6], 128, 128, 8
        $region16: #{tpu_custom_call.1} parent=11 // pred_fallthru
          _
        // Predicated region
        $region17: #{tpu_custom_call.1} parent=11 // pred_check
          %p190 = pneg %p115
        $region18: #{tpu_custom_call.1} parent=11 // pred_check_branch
          %192 = sbr.rel (%p190) target = $region20
        $region19: #{tpu_custom_call.1} parent=11 // pred_region
          %s194 = ssub.s32 2048, 2048
          %195 = vsyncadd [#allocation9], %s194
          %s196 = sshll.u32 [#allocation8], 4
          %s197 = int_to_ptr.vmem [resolvable:$true] %s196
          %202 = dma.hbm_to_vmem [thread:$0]  %s3, 2048, %s197, [#allocation9], 128, 128, 8
        $region20: #{tpu_custom_call.1} parent=11 // pred_fallthru
          _
        // Predicated region
        $region21: #{tpu_custom_call.1} parent=11 // pred_check
          %p203 = pneg %p136
        $region22: #{tpu_custom_call.1} parent=11 // pred_check_branch
          %205 = sbr.rel (%p203) target = $region24
        $region23: #{tpu_custom_call.1} parent=11 // pred_region
          %s207 = ssub.s32 16, 16
          %208 = vsyncadd [#allocation9], %s207
          %s210 = sshll.u32 [#allocation10], 4
          %s211 = int_to_ptr.vmem [resolvable:$true] %s210
          %213 = dma.hbm_to_vmem [thread:$0]  %s4, 16, %s211, [#allocation9]
        $region24: #{tpu_custom_call.1} parent=11 // pred_fallthru
          _
      $region12: #{tpu_custom_call.1} parent=5 // pred_fallthru
        _
      %p214 = scmp.lt.s32.totalorder %s21, 5
      // Predicated region
      $region25: #{tpu_custom_call.1} parent=5 // pred_check
        %p215 = pneg %p214
      $region26: #{tpu_custom_call.1} parent=5 // pred_check_branch
        %217 = sbr.rel (%p215) target = $region28
      $region27: #{tpu_custom_call.1} parent=5 // pred_region
        // Predicated region
        $region29: #{tpu_custom_call.1} parent=27 // pred_check
          %p218 = pneg %p41
        $region30: #{tpu_custom_call.1} parent=27 // pred_check_branch
          %220 = sbr.rel (%p218) target = $region32
        $region31: #{tpu_custom_call.1} parent=27 // pred_region
          %s221 = sand.u32 %s31, 1
          %s222 = scalar_lea.sflag [#allocation3], %s221
          %s223 = sand.u32 %s31, 1
          %s224 = smul.addr %s223, 256
          %s225 = scalar_lea.vmem [#allocation2], %s224
          %s226 = smul.u32 32, %s21
          %s228 = ssub.s32 4096, 4096
          %229 = vsyncadd %s222, %s228
          %s230 = smul.addr %s226, 128
          %s231 = scalar_lea.hbm %s0, %s230
          %s232 = sshll.u32 %s225, 4
          %s233 = int_to_ptr.vmem [resolvable:$true] %s232
          %238 = dma.hbm_to_vmem [thread:$0]  %s231, 4096, %s233, %s222, 128, 128, 8
        $region32: #{tpu_custom_call.1} parent=27 // pred_fallthru
          _
        // Predicated region
        $region33: #{tpu_custom_call.1} parent=27 // pred_check
          %p239 = pneg %p67
        $region34: #{tpu_custom_call.1} parent=27 // pred_check_branch
          %241 = sbr.rel (%p239) target = $region36
        $region35: #{tpu_custom_call.1} parent=27 // pred_region
          %s242 = sand.u32 %s21, 1
          %s243 = scalar_lea.sflag [#allocation6], %s242
          %s244 = sand.u32 %s57, 1
          %s245 = smul.addr %s244, 256
          %s246 = scalar_lea.vmem [#allocation5], %s245
          %s247 = smul.u32 32, %s21
          %s249 = ssub.s32 4096, 4096
          %250 = vsyncadd %s243, %s249
          %s251 = smul.addr %s247, 128
          %s252 = scalar_lea.hbm %s1, %s251
          %s253 = sshll.u32 %s246, 4
          %s254 = int_to_ptr.vmem [resolvable:$true] %s253
          %259 = dma.hbm_to_vmem [thread:$0]  %s252, 4096, %s254, %s243, 128, 128, 8
        $region36: #{tpu_custom_call.1} parent=27 // pred_fallthru
          _
      $region28: #{tpu_custom_call.1} parent=5 // pred_fallthru
        _
      %p260 = scmp.le.s32.totalorder 1, %s21
      %p261 = scmp.lt.s32.totalorder %s21, 6
      %p262 = pnand %p260, %p261
      %p263 = pneg %p262
      // Predicated region
      $region37: #{tpu_custom_call.1} parent=5 // pred_check
        _
      $region38: #{tpu_custom_call.1} parent=5 // pred_check_branch
        %265 = sbr.rel (%p262) target = $region40
      $region39: #{tpu_custom_call.1} parent=5 // pred_region
        %s266 = ssub.s32 %s21, 1
        %s267 = sand.u32 %s34, 1
        %s268 = scalar_lea.sflag [#allocation3], %s267
        %s269 = sand.u32 %s34, 1
        %s270 = smul.addr %s269, 256
        %s271 = scalar_lea.vmem [#allocation2], %s270
        // Predicated region
        $region41: #{tpu_custom_call.1} parent=39 // pred_check
          %p272 = pneg %p47
        $region42: #{tpu_custom_call.1} parent=39 // pred_check_branch
          %274 = sbr.rel (%p272) target = $region44
        $region43: #{tpu_custom_call.1} parent=39 // pred_region
          %275 = dma.done %s268, 4096
        $region44: #{tpu_custom_call.1} parent=39 // pred_fallthru
          _
        %s276 = sand.u32 %s26, 1
        %s277 = scalar_lea.sflag [#allocation6], %s276
        %s278 = sand.u32 %s60, 1
        %s279 = smul.addr %s278, 256
        %s280 = scalar_lea.vmem [#allocation5], %s279
        // Predicated region
        $region45: #{tpu_custom_call.1} parent=39 // pred_check
          %p281 = pneg %p73
        $region46: #{tpu_custom_call.1} parent=39 // pred_check_branch
          %283 = sbr.rel (%p281) target = $region48
        $region47: #{tpu_custom_call.1} parent=39 // pred_region
          %284 = dma.done %s277, 4096
        $region48: #{tpu_custom_call.1} parent=39 // pred_fallthru
          _
        // Predicated region
        $region49: #{tpu_custom_call.1} parent=39 // pred_check
          %p285 = pneg %p94
        $region50: #{tpu_custom_call.1} parent=39 // pred_check_branch
          %287 = sbr.rel (%p285) target = $region52
        $region51: #{tpu_custom_call.1} parent=39 // pred_region
          %288 = dma.done [#allocation6], 256
        $region52: #{tpu_custom_call.1} parent=39 // pred_fallthru
          _
        // Predicated region
        $region53: #{tpu_custom_call.1} parent=39 // pred_check
          %p289 = pneg %p115
        $region54: #{tpu_custom_call.1} parent=39 // pred_check_branch
          %291 = sbr.rel (%p289) target = $region56
        $region55: #{tpu_custom_call.1} parent=39 // pred_region
          %292 = dma.done [#allocation9], 2048
        $region56: #{tpu_custom_call.1} parent=39 // pred_fallthru
          _
        // Predicated region
        $region57: #{tpu_custom_call.1} parent=39 // pred_check
          %p293 = pneg %p136
        $region58: #{tpu_custom_call.1} parent=39 // pred_check_branch
          %295 = sbr.rel (%p293) target = $region60
        $region59: #{tpu_custom_call.1} parent=39 // pred_region
          %296 = dma.done [#allocation9], 16
        $region60: #{tpu_custom_call.1} parent=39 // pred_fallthru
          _
        %s297 = sand.u32 %s34, 1
        %s298 = scalar_lea.sflag [#allocation3], %s297
        %s299 = sand.u32 %s34, 1
        %s300 = smul.addr %s299, 256
        %s301 = scalar_lea.vmem [#allocation2], %s300
        %p302 = pneg %p47
        %p303 = pneg %p44
        %s304 = sand.u32 %s26, 1
        %s305 = scalar_lea.sflag [#allocation6], %s304
        %s306 = sand.u32 %s60, 1
        %s307 = smul.addr %s306, 256
        %s308 = scalar_lea.vmem [#allocation5], %s307
        %p309 = pneg %p73
        %p310 = pneg %p70
        %p311 = pneg %p94
        %p312 = pneg %p91
        %p313 = pneg %p115
        %p314 = pneg %p112
        %p315 = pneg %p136
        %p316 = pneg %p133
        %p317 = pneg %p162
        %p318 = pneg %p159
        %s319 = sand.u32 %s149, 1
        %s320 = scalar_lea.sflag [#allocation4], %s319
        %s321 = sand.u32 %s149, 1
        %s322 = smul.addr %s321, 256
        %s323 = scalar_lea.vmem [#allocation11], %s322
        %s324 = smul.u32 32, %s26
        %s325 = smul.u32 32, %s26
        %s326 = smul.u32 32, %s26
        %v327 = vld [vmem:[%s271] sm:$0xff]
        %v328 = vld [vmem:[%s271 + $0x8] sm:$0xff]
        %v329 = vld [vmem:[%s271 + $0x10] sm:$0xff]
        %v330 = vld [vmem:[%s271 + $0x18] sm:$0xff]
        %v331 = vld [vmem:[%s271 + $0x20] sm:$0xff]
        %v332 = vld [vmem:[%s271 + $0x28] sm:$0xff]
        %v333 = vld [vmem:[%s271 + $0x30] sm:$0xff]
        %v334 = vld [vmem:[%s271 + $0x38] sm:$0xff]
        %v335 = vld [vmem:[%s271 + $0x40] sm:$0xff]
        %v336 = vld [vmem:[%s271 + $0x48] sm:$0xff]
        %v337 = vld [vmem:[%s271 + $0x50] sm:$0xff]
        %v338 = vld [vmem:[%s271 + $0x58] sm:$0xff]
        %v339 = vld [vmem:[%s271 + $0x60] sm:$0xff]
        %v340 = vld [vmem:[%s271 + $0x68] sm:$0xff]
        %v341 = vld [vmem:[%s271 + $0x70] sm:$0xff]
        %v342 = vld [vmem:[%s271 + $0x78] sm:$0xff]
        %v343 = vld [vmem:[%s271 + $0x80] sm:$0xff]
        %v344 = vld [vmem:[%s271 + $0x88] sm:$0xff]
        %v345 = vld [vmem:[%s271 + $0x90] sm:$0xff]
        %v346 = vld [vmem:[%s271 + $0x98] sm:$0xff]
        %v347 = vld [vmem:[%s271 + $0xa0] sm:$0xff]
        %v348 = vld [vmem:[%s271 + $0xa8] sm:$0xff]
        %v349 = vld [vmem:[%s271 + $0xb0] sm:$0xff]
        %v350 = vld [vmem:[%s271 + $0xb8] sm:$0xff]
        %v351 = vld [vmem:[%s271 + $0xc0] sm:$0xff]
        %v352 = vld [vmem:[%s271 + $0xc8] sm:$0xff]
        %v353 = vld [vmem:[%s271 + $0xd0] sm:$0xff]
        %v354 = vld [vmem:[%s271 + $0xd8] sm:$0xff]
        %v355 = vld [vmem:[%s271 + $0xe0] sm:$0xff]
        %v356 = vld [vmem:[%s271 + $0xe8] sm:$0xff]
        %v357 = vld [vmem:[%s271 + $0xf0] sm:$0xff]
        %v358 = vld [vmem:[%s271 + $0xf8] sm:$0xff]
        %v359 = vld [vmem:[#allocation8] sm:$0xff]
        %v360 = vld [vmem:[#allocation8 + $0x8] sm:$0xff]
        %v361 = vld [vmem:[#allocation8 + $0x10] sm:$0xff]
        %v362 = vld [vmem:[#allocation8 + $0x18] sm:$0xff]
        %v363 = vld [vmem:[#allocation8 + $0x20] sm:$0xff]
        %v364 = vld [vmem:[#allocation8 + $0x28] sm:$0xff]
        %v365 = vld [vmem:[#allocation8 + $0x30] sm:$0xff]
        %v366 = vld [vmem:[#allocation8 + $0x38] sm:$0xff]
        %v367 = vld [vmem:[#allocation8 + $0x40] sm:$0xff]
        %v368 = vld [vmem:[#allocation8 + $0x48] sm:$0xff]
        %v369 = vld [vmem:[#allocation8 + $0x50] sm:$0xff]
        %v370 = vld [vmem:[#allocation8 + $0x58] sm:$0xff]
        %v371 = vld [vmem:[#allocation8 + $0x60] sm:$0xff]
        %v372 = vld [vmem:[#allocation8 + $0x68] sm:$0xff]
        %v373 = vld [vmem:[#allocation8 + $0x70] sm:$0xff]
        %v374 = vld [vmem:[#allocation8 + $0x78] sm:$0xff]
        %v375 = vld [vmem:[#allocation10] sm:$0x1]
        %v377 = vlaneseq
        %v378 = vshrl.u32 %v377, 7
        %v379 = vsub.s32 0, %v378
        %v380 = vrot.slane %v375, %v379
        %382 = vmatprep.subr.mxu0 0.0
        %383 = vmatpush1.msra.mxu0 %v359
        %384 = vmatprep.subr.mxu0 0.0
        %385 = vmatpush1.msra.mxu0 %v360
        %386 = vmatprep.subr.mxu0 0.0
        %387 = vmatpush1.msra.mxu0 %v361
        %388 = vmatprep.subr.mxu0 0.0
        %389 = vmatpush1.msra.mxu0 %v362
        %390 = vmatprep.subr.mxu0 0.0
        %391 = vmatpush1.msra.mxu0 %v363
        %392 = vmatprep.subr.mxu0 0.0
        %393 = vmatpush1.msra.mxu0 %v364
        %394 = vmatprep.subr.mxu0 0.0
        %395 = vmatpush1.msra.mxu0 %v365
        %396 = vmatprep.subr.mxu0 0.0
        %397 = vmatpush1.msra.mxu0 %v366
        %398 = vmatprep.subr.mxu0 0.0
        %399 = vmatpush1.msra.mxu0 %v367
        %400 = vmatprep.subr.mxu0 0.0
        %401 = vmatpush1.msra.mxu0 %v368
        %402 = vmatprep.subr.mxu0 0.0
        %403 = vmatpush1.msra.mxu0 %v369
        %404 = vmatprep.subr.mxu0 0.0
        %405 = vmatpush1.msra.mxu0 %v370
        %406 = vmatprep.subr.mxu0 0.0
        %407 = vmatpush1.msra.mxu0 %v371
        %408 = vmatprep.subr.mxu0 0.0
        %409 = vmatpush1.msra.mxu0 %v372
        %410 = vmatprep.subr.mxu0 0.0
        %411 = vmatpush1.msra.mxu0 %v373
        %412 = vmatprep.subr.mxu0 0.0
        %413 = vmatpush1.msra.mxu0 %v374
        %414 = vmatprep.subr.mxu0 0.0
        %415 = vmatpush1.msra.mxu0 0.0
        %416 = vmatprep.subr.mxu0 0.0
        %417 = vmatpush1.msra.mxu0 0.0
        %418 = vmatprep.subr.mxu0 0.0
        %419 = vmatpush1.msra.mxu0 0.0
        %420 = vmatprep.subr.mxu0 0.0
        %421 = vmatpush1.msra.mxu0 0.0
        %422 = vmatprep.subr.mxu0 0.0
        %423 = vmatpush1.msra.mxu0 0.0
        %424 = vmatprep.subr.mxu0 0.0
        %425 = vmatpush1.msra.mxu0 0.0
        %426 = vmatprep.subr.mxu0 0.0
        %427 = vmatpush1.msra.mxu0 0.0
        %428 = vmatprep.subr.mxu0 0.0
        %429 = vmatpush1.msra.mxu0 0.0
        %430 = vmatprep.subr.mxu0 0.0
        %431 = vmatpush1.msra.mxu0 0.0
        %432 = vmatprep.subr.mxu0 0.0
        %433 = vmatpush1.msra.mxu0 0.0
        %434 = vmatprep.subr.mxu0 0.0
        %435 = vmatpush1.msra.mxu0 0.0
        %436 = vmatprep.subr.mxu0 0.0
        %437 = vmatpush1.msra.mxu0 0.0
        %438 = vmatprep.subr.mxu0 0.0
        %439 = vmatpush1.msra.mxu0 0.0
        %440 = vmatprep.subr.mxu0 0.0
        %441 = vmatpush1.msra.mxu0 0.0
        %442 = vmatprep.subr.mxu0 0.0
        %443 = vmatpush1.msra.mxu0 0.0
        %444 = vmatprep.subr.mxu0 0.0
        %445 = vmatpush1.msra.mxu0 0.0
        %446 = vmatprep.mubr.f32.mxu0 0.0
        %447 = vmatmul.mubr.f32.gmra.mrb[0].mxu0 %v327
        %v448 = vpop.f32.mrb[0].mxu0
        %v449 = vadd.f32 %v380, %v448
        %v450 = vpop.f32.mrb[0].mxu0
        %451 = vmatprep.mubr.f32.mxu0 0.0
        %452 = vmatmul.mubr.f32.gmra.mrb[0].mxu0 %v328
        %v453 = vpop.f32.mrb[0].mxu0
        %v454 = vadd.f32 %v380, %v453
        %v455 = vpop.f32.mrb[0].mxu0
        %456 = vmatprep.mubr.f32.mxu0 0.0
        %457 = vmatmul.mubr.f32.gmra.mrb[0].mxu0 %v329
        %v458 = vpop.f32.mrb[0].mxu0
        %v459 = vadd.f32 %v380, %v458
        %v460 = vpop.f32.mrb[0].mxu0
        %461 = vmatprep.mubr.f32.mxu0 0.0
        %462 = vmatmul.mubr.f32.gmra.mrb[0].mxu0 %v330
        %v463 = vpop.f32.mrb[0].mxu0
        %v464 = vadd.f32 %v380, %v463
        %v465 = vpop.f32.mrb[0].mxu0
        %466 = vmatprep.mubr.f32.mxu0 0.0
        %467 = vmatmul.mubr.f32.gmra.mrb[0].mxu0 %v331
        %v468 = vpop.f32.mrb[0].mxu0
        %v469 = vadd.f32 %v380, %v468
        %v470 = vpop.f32.mrb[0].mxu0
        %471 = vmatprep.mubr.f32.mxu0 0.0
        %472 = vmatmul.mubr.f32.gmra.mrb[0].mxu0 %v332
        %v473 = vpop.f32.mrb[0].mxu0
        %v474 = vadd.f32 %v380, %v473
        %v475 = vpop.f32.mrb[0].mxu0
        %476 = vmatprep.mubr.f32.mxu0 0.0
        %477 = vmatmul.mubr.f32.gmra.mrb[0].mxu0 %v333
        %v478 = vpop.f32.mrb[0].mxu0
        %v479 = vadd.f32 %v380, %v478
        %v480 = vpop.f32.mrb[0].mxu0
        %481 = vmatprep.mubr.f32.mxu0 0.0
        %482 = vmatmul.mubr.f32.gmra.mrb[0].mxu0 %v334
        %v483 = vpop.f32.mrb[0].mxu0
        %v484 = vadd.f32 %v380, %v483
        %v485 = vpop.f32.mrb[0].mxu0
        %486 = vmatprep.mubr.f32.mxu0 0.0
        %487 = vmatmul.mubr.f32.gmra.mrb[0].mxu0 %v335
        %v488 = vpop.f32.mrb[0].mxu0
        %v489 = vadd.f32 %v380, %v488
        %v490 = vpop.f32.mrb[0].mxu0
        %491 = vmatprep.mubr.f32.mxu0 0.0
        %492 = vmatmul.mubr.f32.gmra.mrb[0].mxu0 %v336
        %v493 = vpop.f32.mrb[0].mxu0
        %v494 = vadd.f32 %v380, %v493
        %v495 = vpop.f32.mrb[0].mxu0
        %496 = vmatprep.mubr.f32.mxu0 0.0
        %497 = vmatmul.mubr.f32.gmra.mrb[0].mxu0 %v337
        %v498 = vpop.f32.mrb[0].mxu0
        %v499 = vadd.f32 %v380, %v498
        %v500 = vpop.f32.mrb[0].mxu0
        %501 = vmatprep.mubr.f32.mxu0 0.0
        %502 = vmatmul.mubr.f32.gmra.mrb[0].mxu0 %v338
        %v503 = vpop.f32.mrb[0].mxu0
        %v504 = vadd.f32 %v380, %v503
        %v505 = vpop.f32.mrb[0].mxu0
        %506 = vmatprep.mubr.f32.mxu0 0.0
        %507 = vmatmul.mubr.f32.gmra.mrb[0].mxu0 %v339
        %v508 = vpop.f32.mrb[0].mxu0
        %v509 = vadd.f32 %v380, %v508
        %v510 = vpop.f32.mrb[0].mxu0
        %511 = vmatprep.mubr.f32.mxu0 0.0
        %512 = vmatmul.mubr.f32.gmra.mrb[0].mxu0 %v340
        %v513 = vpop.f32.mrb[0].mxu0
        %v514 = vadd.f32 %v380, %v513
        %v515 = vpop.f32.mrb[0].mxu0
        %516 = vmatprep.mubr.f32.mxu0 0.0
        %517 = vmatmul.mubr.f32.gmra.mrb[0].mxu0 %v341
        %v518 = vpop.f32.mrb[0].mxu0
        %v519 = vadd.f32 %v380, %v518
        %v520 = vpop.f32.mrb[0].mxu0
        %521 = vmatprep.mubr.f32.mxu0 0.0
        %522 = vmatmul.mubr.f32.gmra.mrb[0].mxu0 %v342
        %v523 = vpop.f32.mrb[0].mxu0
        %v524 = vadd.f32 %v380, %v523
        %v525 = vpop.f32.mrb[0].mxu0
        %526 = vmatprep.mubr.f32.mxu0 0.0
        %527 = vmatmul.mubr.f32.gmra.mrb[0].mxu0 %v343
        %v528 = vpop.f32.mrb[0].mxu0
        %v529 = vadd.f32 %v380, %v528
        %v530 = vpop.f32.mrb[0].mxu0
        %531 = vmatprep.mubr.f32.mxu0 0.0
        %532 = vmatmul.mubr.f32.gmra.mrb[0].mxu0 %v344
        %v533 = vpop.f32.mrb[0].mxu0
        %v534 = vadd.f32 %v380, %v533
        %v535 = vpop.f32.mrb[0].mxu0
        %536 = vmatprep.mubr.f32.mxu0 0.0
        %537 = vmatmul.mubr.f32.gmra.mrb[0].mxu0 %v345
        %v538 = vpop.f32.mrb[0].mxu0
        %v539 = vadd.f32 %v380, %v538
        %v540 = vpop.f32.mrb[0].mxu0
        %541 = vmatprep.mubr.f32.mxu0 0.0
        %542 = vmatmul.mubr.f32.gmra.mrb[0].mxu0 %v346
        %v543 = vpop.f32.mrb[0].mxu0
        %v544 = vadd.f32 %v380, %v543
        %v545 = vpop.f32.mrb[0].mxu0
        %546 = vmatprep.mubr.f32.mxu0 0.0
        %547 = vmatmul.mubr.f32.gmra.mrb[0].mxu0 %v347
        %v548 = vpop.f32.mrb[0].mxu0
        %v549 = vadd.f32 %v380, %v548
        %v550 = vpop.f32.mrb[0].mxu0
        %551 = vmatprep.mubr.f32.mxu0 0.0
        %552 = vmatmul.mubr.f32.gmra.mrb[0].mxu0 %v348
        %v553 = vpop.f32.mrb[0].mxu0
        %v554 = vadd.f32 %v380, %v553
        %v555 = vpop.f32.mrb[0].mxu0
        %556 = vmatprep.mubr.f32.mxu0 0.0
        %557 = vmatmul.mubr.f32.gmra.mrb[0].mxu0 %v349
        %v558 = vpop.f32.mrb[0].mxu0
        %v559 = vadd.f32 %v380, %v558
        %v560 = vpop.f32.mrb[0].mxu0
        %561 = vmatprep.mubr.f32.mxu0 0.0
        %562 = vmatmul.mubr.f32.gmra.mrb[0].mxu0 %v350
        %v563 = vpop.f32.mrb[0].mxu0
        %v564 = vadd.f32 %v380, %v563
        %v565 = vpop.f32.mrb[0].mxu0
        %566 = vmatprep.mubr.f32.mxu0 0.0
        %567 = vmatmul.mubr.f32.gmra.mrb[0].mxu0 %v351
        %v568 = vpop.f32.mrb[0].mxu0
        %v569 = vadd.f32 %v380, %v568
        %v570 = vpop.f32.mrb[0].mxu0
        %571 = vmatprep.mubr.f32.mxu0 0.0
        %572 = vmatmul.mubr.f32.gmra.mrb[0].mxu0 %v352
        %v573 = vpop.f32.mrb[0].mxu0
        %v574 = vadd.f32 %v380, %v573
        %v575 = vpop.f32.mrb[0].mxu0
        %576 = vmatprep.mubr.f32.mxu0 0.0
        %577 = vmatmul.mubr.f32.gmra.mrb[0].mxu0 %v353
        %v578 = vpop.f32.mrb[0].mxu0
        %v579 = vadd.f32 %v380, %v578
        %v580 = vpop.f32.mrb[0].mxu0
        %581 = vmatprep.mubr.f32.mxu0 0.0
        %582 = vmatmul.mubr.f32.gmra.mrb[0].mxu0 %v354
        %v583 = vpop.f32.mrb[0].mxu0
        %v584 = vadd.f32 %v380, %v583
        %v585 = vpop.f32.mrb[0].mxu0
        %586 = vmatprep.mubr.f32.mxu0 0.0
        %587 = vmatmul.mubr.f32.gmra.mrb[0].mxu0 %v355
        %v588 = vpop.f32.mrb[0].mxu0
        %v589 = vadd.f32 %v380, %v588
        %v590 = vpop.f32.mrb[0].mxu0
        %591 = vmatprep.mubr.f32.mxu0 0.0
        %592 = vmatmul.mubr.f32.gmra.mrb[0].mxu0 %v356
        %v593 = vpop.f32.mrb[0].mxu0
        %v594 = vadd.f32 %v380, %v593
        %v595 = vpop.f32.mrb[0].mxu0
        %596 = vmatprep.mubr.f32.mxu0 0.0
        %597 = vmatmul.mubr.f32.gmra.mrb[0].mxu0 %v357
        %v598 = vpop.f32.mrb[0].mxu0
        %v599 = vadd.f32 %v380, %v598
        %v600 = vpop.f32.mrb[0].mxu0
        %601 = vmatprep.mubr.f32.mxu0 0.0
        %602 = vmatmul.mubr.f32.gmra.mrb[0].mxu0 %v358
        %v603 = vpop.f32.mrb[0].mxu0
        %v604 = vadd.f32 %v380, %v603
        %v605 = vpop.f32.mrb[0].mxu0
        %606 = vdwg.mxu0
        %v607 = vmax.f32 %v449, 0.0
        %v608 = vmax.f32 %v454, 0.0
        %v609 = vmax.f32 %v459, 0.0
        %v610 = vmax.f32 %v464, 0.0
        %v611 = vmax.f32 %v469, 0.0
        %v612 = vmax.f32 %v474, 0.0
        %v613 = vmax.f32 %v479, 0.0
        %v614 = vmax.f32 %v484, 0.0
        %v615 = vmax.f32 %v489, 0.0
        %v616 = vmax.f32 %v494, 0.0
        %v617 = vmax.f32 %v499, 0.0
        %v618 = vmax.f32 %v504, 0.0
        %v619 = vmax.f32 %v509, 0.0
        %v620 = vmax.f32 %v514, 0.0
        %v621 = vmax.f32 %v519, 0.0
        %v622 = vmax.f32 %v524, 0.0
        %v623 = vmax.f32 %v529, 0.0
        %v624 = vmax.f32 %v534, 0.0
        %v625 = vmax.f32 %v539, 0.0
        %v626 = vmax.f32 %v544, 0.0
        %v627 = vmax.f32 %v549, 0.0
        %v628 = vmax.f32 %v554, 0.0
        %v629 = vmax.f32 %v559, 0.0
        %v630 = vmax.f32 %v564, 0.0
        %v631 = vmax.f32 %v569, 0.0
        %v632 = vmax.f32 %v574, 0.0
        %v633 = vmax.f32 %v579, 0.0
        %v634 = vmax.f32 %v584, 0.0
        %v635 = vmax.f32 %v589, 0.0
        %v636 = vmax.f32 %v594, 0.0
        %v637 = vmax.f32 %v599, 0.0
        %v638 = vmax.f32 %v604, 0.0
        %vm639 = vcmp.ne.f32.partialorder %v449, %v449
        %vm640 = vcmp.ne.f32.partialorder %v454, %v454
        %vm641 = vcmp.ne.f32.partialorder %v459, %v459
        %vm642 = vcmp.ne.f32.partialorder %v464, %v464
        %vm643 = vcmp.ne.f32.partialorder %v469, %v469
        %vm644 = vcmp.ne.f32.partialorder %v474, %v474
        %vm645 = vcmp.ne.f32.partialorder %v479, %v479
        %vm646 = vcmp.ne.f32.partialorder %v484, %v484
        %vm647 = vcmp.ne.f32.partialorder %v489, %v489
        %vm648 = vcmp.ne.f32.partialorder %v494, %v494
        %vm649 = vcmp.ne.f32.partialorder %v499, %v499
        %vm650 = vcmp.ne.f32.partialorder %v504, %v504
        %vm651 = vcmp.ne.f32.partialorder %v509, %v509
        %vm652 = vcmp.ne.f32.partialorder %v514, %v514
        %vm653 = vcmp.ne.f32.partialorder %v519, %v519
        %vm654 = vcmp.ne.f32.partialorder %v524, %v524
        %vm655 = vcmp.ne.f32.partialorder %v529, %v529
        %vm656 = vcmp.ne.f32.partialorder %v534, %v534
        %vm657 = vcmp.ne.f32.partialorder %v539, %v539
        %vm658 = vcmp.ne.f32.partialorder %v544, %v544
        %vm659 = vcmp.ne.f32.partialorder %v549, %v549
        %vm660 = vcmp.ne.f32.partialorder %v554, %v554
        %vm661 = vcmp.ne.f32.partialorder %v559, %v559
        %vm662 = vcmp.ne.f32.partialorder %v564, %v564
        %vm663 = vcmp.ne.f32.partialorder %v569, %v569
        %vm664 = vcmp.ne.f32.partialorder %v574, %v574
        %vm665 = vcmp.ne.f32.partialorder %v579, %v579
        %vm666 = vcmp.ne.f32.partialorder %v584, %v584
        %vm667 = vcmp.ne.f32.partialorder %v589, %v589
        %vm668 = vcmp.ne.f32.partialorder %v594, %v594
        %vm669 = vcmp.ne.f32.partialorder %v599, %v599
        %vm670 = vcmp.ne.f32.partialorder %v604, %v604
        %v671 = vadd.f32 %v449, 0.0
        %v672 = vadd.f32 %v454, 0.0
        %v673 = vadd.f32 %v459, 0.0
        %v674 = vadd.f32 %v464, 0.0
        %v675 = vadd.f32 %v469, 0.0
        %v676 = vadd.f32 %v474, 0.0
        %v677 = vadd.f32 %v479, 0.0
        %v678 = vadd.f32 %v484, 0.0
        %v679 = vadd.f32 %v489, 0.0
        %v680 = vadd.f32 %v494, 0.0
        %v681 = vadd.f32 %v499, 0.0
        %v682 = vadd.f32 %v504, 0.0
        %v683 = vadd.f32 %v509, 0.0
        %v684 = vadd.f32 %v514, 0.0
        %v685 = vadd.f32 %v519, 0.0
        %v686 = vadd.f32 %v524, 0.0
        %v687 = vadd.f32 %v529, 0.0
        %v688 = vadd.f32 %v534, 0.0
        %v689 = vadd.f32 %v539, 0.0
        %v690 = vadd.f32 %v544, 0.0
        %v691 = vadd.f32 %v549, 0.0
        %v692 = vadd.f32 %v554, 0.0
        %v693 = vadd.f32 %v559, 0.0
        %v694 = vadd.f32 %v564, 0.0
        %v695 = vadd.f32 %v569, 0.0
        %v696 = vadd.f32 %v574, 0.0
        %v697 = vadd.f32 %v579, 0.0
        %v698 = vadd.f32 %v584, 0.0
        %v699 = vadd.f32 %v589, 0.0
        %v700 = vadd.f32 %v594, 0.0
        %v701 = vadd.f32 %v599, 0.0
        %v702 = vadd.f32 %v604, 0.0
        %v703 = vand.u32 2147483647, %v449
        %v704 = vand.u32 2147483647, %v454
        %v705 = vand.u32 2147483647, %v459
        %v706 = vand.u32 2147483647, %v464
        %v707 = vand.u32 2147483647, %v469
        %v708 = vand.u32 2147483647, %v474
        %v709 = vand.u32 2147483647, %v479
        %v710 = vand.u32 2147483647, %v484
        %v711 = vand.u32 2147483647, %v489
        %v712 = vand.u32 2147483647, %v494
        %v713 = vand.u32 2147483647, %v499
        %v714 = vand.u32 2147483647, %v504
        %v715 = vand.u32 2147483647, %v509
        %v716 = vand.u32 2147483647, %v514
        %v717 = vand.u32 2147483647, %v519
        %v718 = vand.u32 2147483647, %v524
        %v719 = vand.u32 2147483647, %v529
        %v720 = vand.u32 2147483647, %v534
        %v721 = vand.u32 2147483647, %v539
        %v722 = vand.u32 2147483647, %v544
        %v723 = vand.u32 2147483647, %v549
        %v724 = vand.u32 2147483647, %v554
        %v725 = vand.u32 2147483647, %v559
        %v726 = vand.u32 2147483647, %v564
        %v727 = vand.u32 2147483647, %v569
        %v728 = vand.u32 2147483647, %v574
        %v729 = vand.u32 2147483647, %v579
        %v730 = vand.u32 2147483647, %v584
        %v731 = vand.u32 2147483647, %v589
        %v732 = vand.u32 2147483647, %v594
        %v733 = vand.u32 2147483647, %v599
        %v734 = vand.u32 2147483647, %v604
        %v735 = vsub.f32 0.0, %v703
        %v736 = vsub.f32 0.0, %v704
        %v737 = vsub.f32 0.0, %v705
        %v738 = vsub.f32 0.0, %v706
        %v739 = vsub.f32 0.0, %v707
        %v740 = vsub.f32 0.0, %v708
        %v741 = vsub.f32 0.0, %v709
        %v742 = vsub.f32 0.0, %v710
        %v743 = vsub.f32 0.0, %v711
        %v744 = vsub.f32 0.0, %v712
        %v745 = vsub.f32 0.0, %v713
        %v746 = vsub.f32 0.0, %v714
        %v747 = vsub.f32 0.0, %v715
        %v748 = vsub.f32 0.0, %v716
        %v749 = vsub.f32 0.0, %v717
        %v750 = vsub.f32 0.0, %v718
        %v751 = vsub.f32 0.0, %v719
        %v752 = vsub.f32 0.0, %v720
        %v753 = vsub.f32 0.0, %v721
        %v754 = vsub.f32 0.0, %v722
        %v755 = vsub.f32 0.0, %v723
        %v756 = vsub.f32 0.0, %v724
        %v757 = vsub.f32 0.0, %v725
        %v758 = vsub.f32 0.0, %v726
        %v759 = vsub.f32 0.0, %v727
        %v760 = vsub.f32 0.0, %v728
        %v761 = vsub.f32 0.0, %v729
        %v762 = vsub.f32 0.0, %v730
        %v763 = vsub.f32 0.0, %v731
        %v764 = vsub.f32 0.0, %v732
        %v765 = vsub.f32 0.0, %v733
        %v766 = vsub.f32 0.0, %v734
        %v767 = vmul.f32 %v735, 1.442695
        %v768 = vpow.pop %v767
        %v769 = vmul.f32 %v736, 1.442695
        %v770 = vpow.pop %v769
        %v771 = vmul.f32 %v737, 1.442695
        %v772 = vpow.pop %v771
        %v773 = vmul.f32 %v738, 1.442695
        %v774 = vpow.pop %v773
        %v775 = vmul.f32 %v739, 1.442695
        %v776 = vpow.pop %v775
        %v777 = vmul.f32 %v740, 1.442695
        %v778 = vpow.pop %v777
        %v779 = vmul.f32 %v741, 1.442695
        %v780 = vpow.pop %v779
        %v781 = vmul.f32 %v742, 1.442695
        %v782 = vpow.pop %v781
        %v783 = vmul.f32 %v743, 1.442695
        %v784 = vpow.pop %v783
        %v785 = vmul.f32 %v744, 1.442695
        %v786 = vpow.pop %v785
        %v787 = vmul.f32 %v745, 1.442695
        %v788 = vpow.pop %v787
        %v789 = vmul.f32 %v746, 1.442695
        %v790 = vpow.pop %v789
        %v791 = vmul.f32 %v747, 1.442695
        %v792 = vpow.pop %v791
        %v793 = vmul.f32 %v748, 1.442695
        %v794 = vpow.pop %v793
        %v795 = vmul.f32 %v749, 1.442695
        %v796 = vpow.pop %v795
        %v797 = vmul.f32 %v750, 1.442695
        %v798 = vpow.pop %v797
        %v799 = vmul.f32 %v751, 1.442695
        %v800 = vpow.pop %v799
        %v801 = vmul.f32 %v752, 1.442695
        %v802 = vpow.pop %v801
        %v803 = vmul.f32 %v753, 1.442695
        %v804 = vpow.pop %v803
        %v805 = vmul.f32 %v754, 1.442695
        %v806 = vpow.pop %v805
        %v807 = vmul.f32 %v755, 1.442695
        %v808 = vpow.pop %v807
        %v809 = vmul.f32 %v756, 1.442695
        %v810 = vpow.pop %v809
        %v811 = vmul.f32 %v757, 1.442695
        %v812 = vpow.pop %v811
        %v813 = vmul.f32 %v758, 1.442695
        %v814 = vpow.pop %v813
        %v815 = vmul.f32 %v759, 1.442695
        %v816 = vpow.pop %v815
        %v817 = vmul.f32 %v760, 1.442695
        %v818 = vpow.pop %v817
        %v819 = vmul.f32 %v761, 1.442695
        %v820 = vpow.pop %v819
        %v821 = vmul.f32 %v762, 1.442695
        %v822 = vpow.pop %v821
        %v823 = vmul.f32 %v763, 1.442695
        %v824 = vpow.pop %v823
        %v825 = vmul.f32 %v764, 1.442695
        %v826 = vpow.pop %v825
        %v827 = vmul.f32 %v765, 1.442695
        %v828 = vpow.pop %v827
        %v829 = vmul.f32 %v766, 1.442695
        %v830 = vpow.pop %v829
        %v831 = vadd.f32 %v768, 1.0
        %v832 = vlog2.pop %v831
        %v833 = vmul.f32 %v832, 0.6931472
        %v834 = vmul.f32 -0.5, %v768
        %v835 = vadd.f32 %v834, 1.0
        %v836 = vmul.f32 %v835, %v768
        %v837 = vand.u32 2147483647, %v768
        %vm838 = vcmp.lt.f32.partialorder %v837, 0.0004427343
        %v839 = vsel %vm838, %v836, %v833
        %v840 = vadd.f32 %v770, 1.0
        %v841 = vlog2.pop %v840
        %v842 = vmul.f32 %v841, 0.6931472
        %v843 = vmul.f32 -0.5, %v770
        %v844 = vadd.f32 %v843, 1.0
        %v845 = vmul.f32 %v844, %v770
        %v846 = vand.u32 2147483647, %v770
        %vm847 = vcmp.lt.f32.partialorder %v846, 0.0004427343
        %v848 = vsel %vm847, %v845, %v842
        %v849 = vadd.f32 %v772, 1.0
        %v850 = vlog2.pop %v849
        %v851 = vmul.f32 %v850, 0.6931472
        %v852 = vmul.f32 -0.5, %v772
        %v853 = vadd.f32 %v852, 1.0
        %v854 = vmul.f32 %v853, %v772
        %v855 = vand.u32 2147483647, %v772
        %vm856 = vcmp.lt.f32.partialorder %v855, 0.0004427343
        %v857 = vsel %vm856, %v854, %v851
        %v858 = vadd.f32 %v774, 1.0
        %v859 = vlog2.pop %v858
        %v860 = vmul.f32 %v859, 0.6931472
        %v861 = vmul.f32 -0.5, %v774
        %v862 = vadd.f32 %v861, 1.0
        %v863 = vmul.f32 %v862, %v774
        %v864 = vand.u32 2147483647, %v774
        %vm865 = vcmp.lt.f32.partialorder %v864, 0.0004427343
        %v866 = vsel %vm865, %v863, %v860
        %v867 = vadd.f32 %v776, 1.0
        %v868 = vlog2.pop %v867
        %v869 = vmul.f32 %v868, 0.6931472
        %v870 = vmul.f32 -0.5, %v776
        %v871 = vadd.f32 %v870, 1.0
        %v872 = vmul.f32 %v871, %v776
        %v873 = vand.u32 2147483647, %v776
        %vm874 = vcmp.lt.f32.partialorder %v873, 0.0004427343
        %v875 = vsel %vm874, %v872, %v869
        %v876 = vadd.f32 %v778, 1.0
        %v877 = vlog2.pop %v876
        %v878 = vmul.f32 %v877, 0.6931472
        %v879 = vmul.f32 -0.5, %v778
        %v880 = vadd.f32 %v879, 1.0
        %v881 = vmul.f32 %v880, %v778
        %v882 = vand.u32 2147483647, %v778
        %vm883 = vcmp.lt.f32.partialorder %v882, 0.0004427343
        %v884 = vsel %vm883, %v881, %v878
        %v885 = vadd.f32 %v780, 1.0
        %v886 = vlog2.pop %v885
        %v887 = vmul.f32 %v886, 0.6931472
        %v888 = vmul.f32 -0.5, %v780
        %v889 = vadd.f32 %v888, 1.0
        %v890 = vmul.f32 %v889, %v780
        %v891 = vand.u32 2147483647, %v780
        %vm892 = vcmp.lt.f32.partialorder %v891, 0.0004427343
        %v893 = vsel %vm892, %v890, %v887
        %v894 = vadd.f32 %v782, 1.0
        %v895 = vlog2.pop %v894
        %v896 = vmul.f32 %v895, 0.6931472
        %v897 = vmul.f32 -0.5, %v782
        %v898 = vadd.f32 %v897, 1.0
        %v899 = vmul.f32 %v898, %v782
        %v900 = vand.u32 2147483647, %v782
        %vm901 = vcmp.lt.f32.partialorder %v900, 0.0004427343
        %v902 = vsel %vm901, %v899, %v896
        %v903 = vadd.f32 %v784, 1.0
        %v904 = vlog2.pop %v903
        %v905 = vmul.f32 %v904, 0.6931472
        %v906 = vmul.f32 -0.5, %v784
        %v907 = vadd.f32 %v906, 1.0
        %v908 = vmul.f32 %v907, %v784
        %v909 = vand.u32 2147483647, %v784
        %vm910 = vcmp.lt.f32.partialorder %v909, 0.0004427343
        %v911 = vsel %vm910, %v908, %v905
        %v912 = vadd.f32 %v786, 1.0
        %v913 = vlog2.pop %v912
        %v914 = vmul.f32 %v913, 0.6931472
        %v915 = vmul.f32 -0.5, %v786
        %v916 = vadd.f32 %v915, 1.0
        %v917 = vmul.f32 %v916, %v786
        %v918 = vand.u32 2147483647, %v786
        %vm919 = vcmp.lt.f32.partialorder %v918, 0.0004427343
        %v920 = vsel %vm919, %v917, %v914
        %v921 = vadd.f32 %v788, 1.0
        %v922 = vlog2.pop %v921
        %v923 = vmul.f32 %v922, 0.6931472
        %v924 = vmul.f32 -0.5, %v788
        %v925 = vadd.f32 %v924, 1.0
        %v926 = vmul.f32 %v925, %v788
        %v927 = vand.u32 2147483647, %v788
        %vm928 = vcmp.lt.f32.partialorder %v927, 0.0004427343
        %v929 = vsel %vm928, %v926, %v923
        %v930 = vadd.f32 %v790, 1.0
        %v931 = vlog2.pop %v930
        %v932 = vmul.f32 %v931, 0.6931472
        %v933 = vmul.f32 -0.5, %v790
        %v934 = vadd.f32 %v933, 1.0
        %v935 = vmul.f32 %v934, %v790
        %v936 = vand.u32 2147483647, %v790
        %vm937 = vcmp.lt.f32.partialorder %v936, 0.0004427343
        %v938 = vsel %vm937, %v935, %v932
        %v939 = vadd.f32 %v792, 1.0
        %v940 = vlog2.pop %v939
        %v941 = vmul.f32 %v940, 0.6931472
        %v942 = vmul.f32 -0.5, %v792
        %v943 = vadd.f32 %v942, 1.0
        %v944 = vmul.f32 %v943, %v792
        %v945 = vand.u32 2147483647, %v792
        %vm946 = vcmp.lt.f32.partialorder %v945, 0.0004427343
        %v947 = vsel %vm946, %v944, %v941
        %v948 = vadd.f32 %v794, 1.0
        %v949 = vlog2.pop %v948
        %v950 = vmul.f32 %v949, 0.6931472
        %v951 = vmul.f32 -0.5, %v794
        %v952 = vadd.f32 %v951, 1.0
        %v953 = vmul.f32 %v952, %v794
        %v954 = vand.u32 2147483647, %v794
        %vm955 = vcmp.lt.f32.partialorder %v954, 0.0004427343
        %v956 = vsel %vm955, %v953, %v950
        %v957 = vadd.f32 %v796, 1.0
        %v958 = vlog2.pop %v957
        %v959 = vmul.f32 %v958, 0.6931472
        %v960 = vmul.f32 -0.5, %v796
        %v961 = vadd.f32 %v960, 1.0
        %v962 = vmul.f32 %v961, %v796
        %v963 = vand.u32 2147483647, %v796
        %vm964 = vcmp.lt.f32.partialorder %v963, 0.0004427343
        %v965 = vsel %vm964, %v962, %v959
        %v966 = vadd.f32 %v798, 1.0
        %v967 = vlog2.pop %v966
        %v968 = vmul.f32 %v967, 0.6931472
        %v969 = vmul.f32 -0.5, %v798
        %v970 = vadd.f32 %v969, 1.0
        %v971 = vmul.f32 %v970, %v798
        %v972 = vand.u32 2147483647, %v798
        %vm973 = vcmp.lt.f32.partialorder %v972, 0.0004427343
        %v974 = vsel %vm973, %v971, %v968
        %v975 = vadd.f32 %v800, 1.0
        %v976 = vlog2.pop %v975
        %v977 = vmul.f32 %v976, 0.6931472
        %v978 = vmul.f32 -0.5, %v800
        %v979 = vadd.f32 %v978, 1.0
        %v980 = vmul.f32 %v979, %v800
        %v981 = vand.u32 2147483647, %v800
        %vm982 = vcmp.lt.f32.partialorder %v981, 0.0004427343
        %v983 = vsel %vm982, %v980, %v977
        %v984 = vadd.f32 %v802, 1.0
        %v985 = vlog2.pop %v984
        %v986 = vmul.f32 %v985, 0.6931472
        %v987 = vmul.f32 -0.5, %v802
        %v988 = vadd.f32 %v987, 1.0
        %v989 = vmul.f32 %v988, %v802
        %v990 = vand.u32 2147483647, %v802
        %vm991 = vcmp.lt.f32.partialorder %v990, 0.0004427343
        %v992 = vsel %vm991, %v989, %v986
        %v993 = vadd.f32 %v804, 1.0
        %v994 = vlog2.pop %v993
        %v995 = vmul.f32 %v994, 0.6931472
        %v996 = vmul.f32 -0.5, %v804
        %v997 = vadd.f32 %v996, 1.0
        %v998 = vmul.f32 %v997, %v804
        %v999 = vand.u32 2147483647, %v804
        %vm1000 = vcmp.lt.f32.partialorder %v999, 0.0004427343
        %v1001 = vsel %vm1000, %v998, %v995
        %v1002 = vadd.f32 %v806, 1.0
        %v1003 = vlog2.pop %v1002
        %v1004 = vmul.f32 %v1003, 0.6931472
        %v1005 = vmul.f32 -0.5, %v806
        %v1006 = vadd.f32 %v1005, 1.0
        %v1007 = vmul.f32 %v1006, %v806
        %v1008 = vand.u32 2147483647, %v806
        %vm1009 = vcmp.lt.f32.partialorder %v1008, 0.0004427343
        %v1010 = vsel %vm1009, %v1007, %v1004
        %v1011 = vadd.f32 %v808, 1.0
        %v1012 = vlog2.pop %v1011
        %v1013 = vmul.f32 %v1012, 0.6931472
        %v1014 = vmul.f32 -0.5, %v808
        %v1015 = vadd.f32 %v1014, 1.0
        %v1016 = vmul.f32 %v1015, %v808
        %v1017 = vand.u32 2147483647, %v808
        %vm1018 = vcmp.lt.f32.partialorder %v1017, 0.0004427343
        %v1019 = vsel %vm1018, %v1016, %v1013
        %v1020 = vadd.f32 %v810, 1.0
        %v1021 = vlog2.pop %v1020
        %v1022 = vmul.f32 %v1021, 0.6931472
        %v1023 = vmul.f32 -0.5, %v810
        %v1024 = vadd.f32 %v1023, 1.0
        %v1025 = vmul.f32 %v1024, %v810
        %v1026 = vand.u32 2147483647, %v810
        %vm1027 = vcmp.lt.f32.partialorder %v1026, 0.0004427343
        %v1028 = vsel %vm1027, %v1025, %v1022
        %v1029 = vadd.f32 %v812, 1.0
        %v1030 = vlog2.pop %v1029
        %v1031 = vmul.f32 %v1030, 0.6931472
        %v1032 = vmul.f32 -0.5, %v812
        %v1033 = vadd.f32 %v1032, 1.0
        %v1034 = vmul.f32 %v1033, %v812
        %v1035 = vand.u32 2147483647, %v812
        %vm1036 = vcmp.lt.f32.partialorder %v1035, 0.0004427343
        %v1037 = vsel %vm1036, %v1034, %v1031
        %v1038 = vadd.f32 %v814, 1.0
        %v1039 = vlog2.pop %v1038
        %v1040 = vmul.f32 %v1039, 0.6931472
        %v1041 = vmul.f32 -0.5, %v814
        %v1042 = vadd.f32 %v1041, 1.0
        %v1043 = vmul.f32 %v1042, %v814
        %v1044 = vand.u32 2147483647, %v814
        %vm1045 = vcmp.lt.f32.partialorder %v1044, 0.0004427343
        %v1046 = vsel %vm1045, %v1043, %v1040
        %v1047 = vadd.f32 %v816, 1.0
        %v1048 = vlog2.pop %v1047
        %v1049 = vmul.f32 %v1048, 0.6931472
        %v1050 = vmul.f32 -0.5, %v816
        %v1051 = vadd.f32 %v1050, 1.0
        %v1052 = vmul.f32 %v1051, %v816
        %v1053 = vand.u32 2147483647, %v816
        %vm1054 = vcmp.lt.f32.partialorder %v1053, 0.0004427343
        %v1055 = vsel %vm1054, %v1052, %v1049
        %v1056 = vadd.f32 %v818, 1.0
        %v1057 = vlog2.pop %v1056
        %v1058 = vmul.f32 %v1057, 0.6931472
        %v1059 = vmul.f32 -0.5, %v818
        %v1060 = vadd.f32 %v1059, 1.0
        %v1061 = vmul.f32 %v1060, %v818
        %v1062 = vand.u32 2147483647, %v818
        %vm1063 = vcmp.lt.f32.partialorder %v1062, 0.0004427343
        %v1064 = vsel %vm1063, %v1061, %v1058
        %v1065 = vadd.f32 %v820, 1.0
        %v1066 = vlog2.pop %v1065
        %v1067 = vmul.f32 %v1066, 0.6931472
        %v1068 = vmul.f32 -0.5, %v820
        %v1069 = vadd.f32 %v1068, 1.0
        %v1070 = vmul.f32 %v1069, %v820
        %v1071 = vand.u32 2147483647, %v820
        %vm1072 = vcmp.lt.f32.partialorder %v1071, 0.0004427343
        %v1073 = vsel %vm1072, %v1070, %v1067
        %v1074 = vadd.f32 %v822, 1.0
        %v1075 = vlog2.pop %v1074
        %v1076 = vmul.f32 %v1075, 0.6931472
        %v1077 = vmul.f32 -0.5, %v822
        %v1078 = vadd.f32 %v1077, 1.0
        %v1079 = vmul.f32 %v1078, %v822
        %v1080 = vand.u32 2147483647, %v822
        %vm1081 = vcmp.lt.f32.partialorder %v1080, 0.0004427343
        %v1082 = vsel %vm1081, %v1079, %v1076
        %v1083 = vadd.f32 %v824, 1.0
        %v1084 = vlog2.pop %v1083
        %v1085 = vmul.f32 %v1084, 0.6931472
        %v1086 = vmul.f32 -0.5, %v824
        %v1087 = vadd.f32 %v1086, 1.0
        %v1088 = vmul.f32 %v1087, %v824
        %v1089 = vand.u32 2147483647, %v824
        %vm1090 = vcmp.lt.f32.partialorder %v1089, 0.0004427343
        %v1091 = vsel %vm1090, %v1088, %v1085
        %v1092 = vadd.f32 %v826, 1.0
        %v1093 = vlog2.pop %v1092
        %v1094 = vmul.f32 %v1093, 0.6931472
        %v1095 = vmul.f32 -0.5, %v826
        %v1096 = vadd.f32 %v1095, 1.0
        %v1097 = vmul.f32 %v1096, %v826
        %v1098 = vand.u32 2147483647, %v826
        %vm1099 = vcmp.lt.f32.partialorder %v1098, 0.0004427343
        %v1100 = vsel %vm1099, %v1097, %v1094
        %v1101 = vadd.f32 %v828, 1.0
        %v1102 = vlog2.pop %v1101
        %v1103 = vmul.f32 %v1102, 0.6931472
        %v1104 = vmul.f32 -0.5, %v828
        %v1105 = vadd.f32 %v1104, 1.0
        %v1106 = vmul.f32 %v1105, %v828
        %v1107 = vand.u32 2147483647, %v828
        %vm1108 = vcmp.lt.f32.partialorder %v1107, 0.0004427343
        %v1109 = vsel %vm1108, %v1106, %v1103
        %v1110 = vadd.f32 %v830, 1.0
        %v1111 = vlog2.pop %v1110
        %v1112 = vmul.f32 %v1111, 0.6931472
        %v1113 = vmul.f32 -0.5, %v830
        %v1114 = vadd.f32 %v1113, 1.0
        %v1115 = vmul.f32 %v1114, %v830
        %v1116 = vand.u32 2147483647, %v830
        %vm1117 = vcmp.lt.f32.partialorder %v1116, 0.0004427343
        %v1118 = vsel %vm1117, %v1115, %v1112
        %v1119 = vadd.f32 %v607, %v839
        %v1120 = vadd.f32 %v608, %v848
        %v1121 = vadd.f32 %v609, %v857
        %v1122 = vadd.f32 %v610, %v866
        %v1123 = vadd.f32 %v611, %v875
        %v1124 = vadd.f32 %v612, %v884
        %v1125 = vadd.f32 %v613, %v893
        %v1126 = vadd.f32 %v614, %v902
        %v1127 = vadd.f32 %v615, %v911
        %v1128 = vadd.f32 %v616, %v920
        %v1129 = vadd.f32 %v617, %v929
        %v1130 = vadd.f32 %v618, %v938
        %v1131 = vadd.f32 %v619, %v947
        %v1132 = vadd.f32 %v620, %v956
        %v1133 = vadd.f32 %v621, %v965
        %v1134 = vadd.f32 %v622, %v974
        %v1135 = vadd.f32 %v623, %v983
        %v1136 = vadd.f32 %v624, %v992
        %v1137 = vadd.f32 %v625, %v1001
        %v1138 = vadd.f32 %v626, %v1010
        %v1139 = vadd.f32 %v627, %v1019
        %v1140 = vadd.f32 %v628, %v1028
        %v1141 = vadd.f32 %v629, %v1037
        %v1142 = vadd.f32 %v630, %v1046
        %v1143 = vadd.f32 %v631, %v1055
        %v1144 = vadd.f32 %v632, %v1064
        %v1145 = vadd.f32 %v633, %v1073
        %v1146 = vadd.f32 %v634, %v1082
        %v1147 = vadd.f32 %v635, %v1091
        %v1148 = vadd.f32 %v636, %v1100
        %v1149 = vadd.f32 %v637, %v1109
        %v1150 = vadd.f32 %v638, %v1118
        %v1151 = vsel %vm639, %v671, %v1119
        %v1152 = vsel %vm640, %v672, %v1120
        %v1153 = vsel %vm641, %v673, %v1121
        %v1154 = vsel %vm642, %v674, %v1122
        %v1155 = vsel %vm643, %v675, %v1123
        %v1156 = vsel %vm644, %v676, %v1124
        %v1157 = vsel %vm645, %v677, %v1125
        %v1158 = vsel %vm646, %v678, %v1126
        %v1159 = vsel %vm647, %v679, %v1127
        %v1160 = vsel %vm648, %v680, %v1128
        %v1161 = vsel %vm649, %v681, %v1129
        %v1162 = vsel %vm650, %v682, %v1130
        %v1163 = vsel %vm651, %v683, %v1131
        %v1164 = vsel %vm652, %v684, %v1132
        %v1165 = vsel %vm653, %v685, %v1133
        %v1166 = vsel %vm654, %v686, %v1134
        %v1167 = vsel %vm655, %v687, %v1135
        %v1168 = vsel %vm656, %v688, %v1136
        %v1169 = vsel %vm657, %v689, %v1137
        %v1170 = vsel %vm658, %v690, %v1138
        %v1171 = vsel %vm659, %v691, %v1139
        %v1172 = vsel %vm660, %v692, %v1140
        %v1173 = vsel %vm661, %v693, %v1141
        %v1174 = vsel %vm662, %v694, %v1142
        %v1175 = vsel %vm663, %v695, %v1143
        %v1176 = vsel %vm664, %v696, %v1144
        %v1177 = vsel %vm665, %v697, %v1145
        %v1178 = vsel %vm666, %v698, %v1146
        %v1179 = vsel %vm667, %v699, %v1147
        %v1180 = vsel %vm668, %v700, %v1148
        %v1181 = vsel %vm669, %v701, %v1149
        %v1182 = vsel %vm670, %v702, %v1150
        %v1183 = vld [vmem:[%s280] sm:$0xff]
        %v1184 = vld [vmem:[%s280 + $0x8] sm:$0xff]
        %v1185 = vld [vmem:[%s280 + $0x10] sm:$0xff]
        %v1186 = vld [vmem:[%s280 + $0x18] sm:$0xff]
        %v1187 = vld [vmem:[%s280 + $0x20] sm:$0xff]
        %v1188 = vld [vmem:[%s280 + $0x28] sm:$0xff]
        %v1189 = vld [vmem:[%s280 + $0x30] sm:$0xff]
        %v1190 = vld [vmem:[%s280 + $0x38] sm:$0xff]
        %v1191 = vld [vmem:[%s280 + $0x40] sm:$0xff]
        %v1192 = vld [vmem:[%s280 + $0x48] sm:$0xff]
        %v1193 = vld [vmem:[%s280 + $0x50] sm:$0xff]
        %v1194 = vld [vmem:[%s280 + $0x58] sm:$0xff]
        %v1195 = vld [vmem:[%s280 + $0x60] sm:$0xff]
        %v1196 = vld [vmem:[%s280 + $0x68] sm:$0xff]
        %v1197 = vld [vmem:[%s280 + $0x70] sm:$0xff]
        %v1198 = vld [vmem:[%s280 + $0x78] sm:$0xff]
        %v1199 = vld [vmem:[%s280 + $0x80] sm:$0xff]
        %v1200 = vld [vmem:[%s280 + $0x88] sm:$0xff]
        %v1201 = vld [vmem:[%s280 + $0x90] sm:$0xff]
        %v1202 = vld [vmem:[%s280 + $0x98] sm:$0xff]
        %v1203 = vld [vmem:[%s280 + $0xa0] sm:$0xff]
        %v1204 = vld [vmem:[%s280 + $0xa8] sm:$0xff]
        %v1205 = vld [vmem:[%s280 + $0xb0] sm:$0xff]
        %v1206 = vld [vmem:[%s280 + $0xb8] sm:$0xff]
        %v1207 = vld [vmem:[%s280 + $0xc0] sm:$0xff]
        %v1208 = vld [vmem:[%s280 + $0xc8] sm:$0xff]
        %v1209 = vld [vmem:[%s280 + $0xd0] sm:$0xff]
        %v1210 = vld [vmem:[%s280 + $0xd8] sm:$0xff]
        %v1211 = vld [vmem:[%s280 + $0xe0] sm:$0xff]
        %v1212 = vld [vmem:[%s280 + $0xe8] sm:$0xff]
        %v1213 = vld [vmem:[%s280 + $0xf0] sm:$0xff]
        %v1214 = vld [vmem:[%s280 + $0xf8] sm:$0xff]
        %v1215 = vld [vmem:[#allocation7] sm:$0xff]
        %v1216 = vld [vmem:[#allocation7 + $0x8] sm:$0xff]
        %vm1217 = vcmask 130048
        %v1219 = vsel %vm1217, %v1183, 0
        %v1222 = vsel %vm1217, %v1184, 0
        %v1225 = vsel %vm1217, %v1185, 0
        %v1228 = vsel %vm1217, %v1186, 0
        %v1231 = vsel %vm1217, %v1187, 0
        %v1234 = vsel %vm1217, %v1188, 0
        %v1237 = vsel %vm1217, %v1189, 0
        %v1240 = vsel %vm1217, %v1190, 0
        %v1243 = vsel %vm1217, %v1191, 0
        %v1246 = vsel %vm1217, %v1192, 0
        %v1249 = vsel %vm1217, %v1193, 0
        %v1252 = vsel %vm1217, %v1194, 0
        %v1255 = vsel %vm1217, %v1195, 0
        %v1258 = vsel %vm1217, %v1196, 0
        %v1261 = vsel %vm1217, %v1197, 0
        %v1264 = vsel %vm1217, %v1198, 0
        %v1267 = vsel %vm1217, %v1199, 0
        %v1270 = vsel %vm1217, %v1200, 0
        %v1273 = vsel %vm1217, %v1201, 0
        %v1276 = vsel %vm1217, %v1202, 0
        %v1279 = vsel %vm1217, %v1203, 0
        %v1282 = vsel %vm1217, %v1204, 0
        %v1285 = vsel %vm1217, %v1205, 0
        %v1288 = vsel %vm1217, %v1206, 0
        %v1291 = vsel %vm1217, %v1207, 0
        %v1294 = vsel %vm1217, %v1208, 0
        %v1297 = vsel %vm1217, %v1209, 0
        %v1300 = vsel %vm1217, %v1210, 0
        %v1303 = vsel %vm1217, %v1211, 0
        %v1306 = vsel %vm1217, %v1212, 0
        %v1309 = vsel %vm1217, %v1213, 0
        %v1312 = vsel %vm1217, %v1214, 0
        %1314 = vmatprep.subr.mxu0 0.0
        %1315 = vmatpush1.msra.mxu0 %v1215
        %1316 = vmatprep.subr.mxu0 0.0
        %1317 = vmatpush1.msra.mxu0 %v1216
        %1318 = vmatprep.subr.mxu0 0.0
        %1319 = vmatpush1.msra.mxu0 0.0
        %1320 = vmatprep.subr.mxu0 0.0
        %1321 = vmatpush1.msra.mxu0 0.0
        %1322 = vmatprep.subr.mxu0 0.0
        %1323 = vmatpush1.msra.mxu0 0.0
        %1324 = vmatprep.subr.mxu0 0.0
        %1325 = vmatpush1.msra.mxu0 0.0
        %1326 = vmatprep.subr.mxu0 0.0
        %1327 = vmatpush1.msra.mxu0 0.0
        %1328 = vmatprep.subr.mxu0 0.0
        %1329 = vmatpush1.msra.mxu0 0.0
        %1330 = vmatprep.subr.mxu0 0.0
        %1331 = vmatpush1.msra.mxu0 0.0
        %1332 = vmatprep.subr.mxu0 0.0
        %1333 = vmatpush1.msra.mxu0 0.0
        %1334 = vmatprep.subr.mxu0 0.0
        %1335 = vmatpush1.msra.mxu0 0.0
        %1336 = vmatprep.subr.mxu0 0.0
        %1337 = vmatpush1.msra.mxu0 0.0
        %1338 = vmatprep.subr.mxu0 0.0
        %1339 = vmatpush1.msra.mxu0 0.0
        %1340 = vmatprep.subr.mxu0 0.0
        %1341 = vmatpush1.msra.mxu0 0.0
        %1342 = vmatprep.subr.mxu0 0.0
        %1343 = vmatpush1.msra.mxu0 0.0
        %1344 = vmatprep.subr.mxu0 0.0
        %1345 = vmatpush1.msra.mxu0 0.0
        %1346 = vmatprep.subr.mxu0 0.0
        %1347 = vmatpush1.msra.mxu0 0.0
        %1348 = vmatprep.subr.mxu0 0.0
        %1349 = vmatpush1.msra.mxu0 0.0
        %1350 = vmatprep.subr.mxu0 0.0
        %1351 = vmatpush1.msra.mxu0 0.0
        %1352 = vmatprep.subr.mxu0 0.0
        %1353 = vmatpush1.msra.mxu0 0.0
        %1354 = vmatprep.subr.mxu0 0.0
        %1355 = vmatpush1.msra.mxu0 0.0
        %1356 = vmatprep.subr.mxu0 0.0
        %1357 = vmatpush1.msra.mxu0 0.0
        %1358 = vmatprep.subr.mxu0 0.0
        %1359 = vmatpush1.msra.mxu0 0.0
        %1360 = vmatprep.subr.mxu0 0.0
        %1361 = vmatpush1.msra.mxu0 0.0
        %1362 = vmatprep.subr.mxu0 0.0
        %1363 = vmatpush1.msra.mxu0 0.0
        %1364 = vmatprep.subr.mxu0 0.0
        %1365 = vmatpush1.msra.mxu0 0.0
        %1366 = vmatprep.subr.mxu0 0.0
        %1367 = vmatpush1.msra.mxu0 0.0
        %1368 = vmatprep.subr.mxu0 0.0
        %1369 = vmatpush1.msra.mxu0 0.0
        %1370 = vmatprep.subr.mxu0 0.0
        %1371 = vmatpush1.msra.mxu0 0.0
        %1372 = vmatprep.subr.mxu0 0.0
        %1373 = vmatpush1.msra.mxu0 0.0
        %1374 = vmatprep.subr.mxu0 0.0
        %1375 = vmatpush1.msra.mxu0 0.0
        %1376 = vmatprep.subr.mxu0 0.0
        %1377 = vmatpush1.msra.mxu0 0.0
        %1378 = vmatprep.mubr.f32.mxu0 0.0
        %1379 = vmatmul.mubr.f32.gmra.mrb[0].mxu0 %v1219
        %v1380 = vpop.f32.mrb[0].mxu0
        %v1381 = vadd.f32 0.0, %v1380
        %v1382 = vpop.f32.mrb[0].mxu0
        %1383 = vmatprep.mubr.f32.mxu0 0.0
        %1384 = vmatmul.mubr.f32.gmra.mrb[0].mxu0 %v1222
        %v1385 = vpop.f32.mrb[0].mxu0
        %v1386 = vadd.f32 0.0, %v1385
        %v1387 = vpop.f32.mrb[0].mxu0
        %1388 = vmatprep.mubr.f32.mxu0 0.0
        %1389 = vmatmul.mubr.f32.gmra.mrb[0].mxu0 %v1225
        %v1390 = vpop.f32.mrb[0].mxu0
        %v1391 = vadd.f32 0.0, %v1390
        %v1392 = vpop.f32.mrb[0].mxu0
        %1393 = vmatprep.mubr.f32.mxu0 0.0
        %1394 = vmatmul.mubr.f32.gmra.mrb[0].mxu0 %v1228
        %v1395 = vpop.f32.mrb[0].mxu0
        %v1396 = vadd.f32 0.0, %v1395
        %v1397 = vpop.f32.mrb[0].mxu0
        %1398 = vmatprep.mubr.f32.mxu0 0.0
        %1399 = vmatmul.mubr.f32.gmra.mrb[0].mxu0 %v1231
        %v1400 = vpop.f32.mrb[0].mxu0
        %v1401 = vadd.f32 0.0, %v1400
        %v1402 = vpop.f32.mrb[0].mxu0
        %1403 = vmatprep.mubr.f32.mxu0 0.0
        %1404 = vmatmul.mubr.f32.gmra.mrb[0].mxu0 %v1234
        %v1405 = vpop.f32.mrb[0].mxu0
        %v1406 = vadd.f32 0.0, %v1405
        %v1407 = vpop.f32.mrb[0].mxu0
        %1408 = vmatprep.mubr.f32.mxu0 0.0
        %1409 = vmatmul.mubr.f32.gmra.mrb[0].mxu0 %v1237
        %v1410 = vpop.f32.mrb[0].mxu0
        %v1411 = vadd.f32 0.0, %v1410
        %v1412 = vpop.f32.mrb[0].mxu0
        %1413 = vmatprep.mubr.f32.mxu0 0.0
        %1414 = vmatmul.mubr.f32.gmra.mrb[0].mxu0 %v1240
        %v1415 = vpop.f32.mrb[0].mxu0
        %v1416 = vadd.f32 0.0, %v1415
        %v1417 = vpop.f32.mrb[0].mxu0
        %1418 = vmatprep.mubr.f32.mxu0 0.0
        %1419 = vmatmul.mubr.f32.gmra.mrb[0].mxu0 %v1243
        %v1420 = vpop.f32.mrb[0].mxu0
        %v1421 = vadd.f32 0.0, %v1420
        %v1422 = vpop.f32.mrb[0].mxu0
        %1423 = vmatprep.mubr.f32.mxu0 0.0
        %1424 = vmatmul.mubr.f32.gmra.mrb[0].mxu0 %v1246
        %v1425 = vpop.f32.mrb[0].mxu0
        %v1426 = vadd.f32 0.0, %v1425
        %v1427 = vpop.f32.mrb[0].mxu0
        %1428 = vmatprep.mubr.f32.mxu0 0.0
        %1429 = vmatmul.mubr.f32.gmra.mrb[0].mxu0 %v1249
        %v1430 = vpop.f32.mrb[0].mxu0
        %v1431 = vadd.f32 0.0, %v1430
        %v1432 = vpop.f32.mrb[0].mxu0
        %1433 = vmatprep.mubr.f32.mxu0 0.0
        %1434 = vmatmul.mubr.f32.gmra.mrb[0].mxu0 %v1252
        %v1435 = vpop.f32.mrb[0].mxu0
        %v1436 = vadd.f32 0.0, %v1435
        %v1437 = vpop.f32.mrb[0].mxu0
        %1438 = vmatprep.mubr.f32.mxu0 0.0
        %1439 = vmatmul.mubr.f32.gmra.mrb[0].mxu0 %v1255
        %v1440 = vpop.f32.mrb[0].mxu0
        %v1441 = vadd.f32 0.0, %v1440
        %v1442 = vpop.f32.mrb[0].mxu0
        %1443 = vmatprep.mubr.f32.mxu0 0.0
        %1444 = vmatmul.mubr.f32.gmra.mrb[0].mxu0 %v1258
        %v1445 = vpop.f32.mrb[0].mxu0
        %v1446 = vadd.f32 0.0, %v1445
        %v1447 = vpop.f32.mrb[0].mxu0
        %1448 = vmatprep.mubr.f32.mxu0 0.0
        %1449 = vmatmul.mubr.f32.gmra.mrb[0].mxu0 %v1261
        %v1450 = vpop.f32.mrb[0].mxu0
        %v1451 = vadd.f32 0.0, %v1450
        %v1452 = vpop.f32.mrb[0].mxu0
        %1453 = vmatprep.mubr.f32.mxu0 0.0
        %1454 = vmatmul.mubr.f32.gmra.mrb[0].mxu0 %v1264
        %v1455 = vpop.f32.mrb[0].mxu0
        %v1456 = vadd.f32 0.0, %v1455
        %v1457 = vpop.f32.mrb[0].mxu0
        %1458 = vmatprep.mubr.f32.mxu0 0.0
        %1459 = vmatmul.mubr.f32.gmra.mrb[0].mxu0 %v1267
        %v1460 = vpop.f32.mrb[0].mxu0
        %v1461 = vadd.f32 0.0, %v1460
        %v1462 = vpop.f32.mrb[0].mxu0
        %1463 = vmatprep.mubr.f32.mxu0 0.0
        %1464 = vmatmul.mubr.f32.gmra.mrb[0].mxu0 %v1270
        %v1465 = vpop.f32.mrb[0].mxu0
        %v1466 = vadd.f32 0.0, %v1465
        %v1467 = vpop.f32.mrb[0].mxu0
        %1468 = vmatprep.mubr.f32.mxu0 0.0
        %1469 = vmatmul.mubr.f32.gmra.mrb[0].mxu0 %v1273
        %v1470 = vpop.f32.mrb[0].mxu0
        %v1471 = vadd.f32 0.0, %v1470
        %v1472 = vpop.f32.mrb[0].mxu0
        %1473 = vmatprep.mubr.f32.mxu0 0.0
        %1474 = vmatmul.mubr.f32.gmra.mrb[0].mxu0 %v1276
        %v1475 = vpop.f32.mrb[0].mxu0
        %v1476 = vadd.f32 0.0, %v1475
        %v1477 = vpop.f32.mrb[0].mxu0
        %1478 = vmatprep.mubr.f32.mxu0 0.0
        %1479 = vmatmul.mubr.f32.gmra.mrb[0].mxu0 %v1279
        %v1480 = vpop.f32.mrb[0].mxu0
        %v1481 = vadd.f32 0.0, %v1480
        %v1482 = vpop.f32.mrb[0].mxu0
        %1483 = vmatprep.mubr.f32.mxu0 0.0
        %1484 = vmatmul.mubr.f32.gmra.mrb[0].mxu0 %v1282
        %v1485 = vpop.f32.mrb[0].mxu0
        %v1486 = vadd.f32 0.0, %v1485
        %v1487 = vpop.f32.mrb[0].mxu0
        %1488 = vmatprep.mubr.f32.mxu0 0.0
        %1489 = vmatmul.mubr.f32.gmra.mrb[0].mxu0 %v1285
        %v1490 = vpop.f32.mrb[0].mxu0
        %v1491 = vadd.f32 0.0, %v1490
        %v1492 = vpop.f32.mrb[0].mxu0
        %1493 = vmatprep.mubr.f32.mxu0 0.0
        %1494 = vmatmul.mubr.f32.gmra.mrb[0].mxu0 %v1288
        %v1495 = vpop.f32.mrb[0].mxu0
        %v1496 = vadd.f32 0.0, %v1495
        %v1497 = vpop.f32.mrb[0].mxu0
        %1498 = vmatprep.mubr.f32.mxu0 0.0
        %1499 = vmatmul.mubr.f32.gmra.mrb[0].mxu0 %v1291
        %v1500 = vpop.f32.mrb[0].mxu0
        %v1501 = vadd.f32 0.0, %v1500
        %v1502 = vpop.f32.mrb[0].mxu0
        %1503 = vmatprep.mubr.f32.mxu0 0.0
        %1504 = vmatmul.mubr.f32.gmra.mrb[0].mxu0 %v1294
        %v1505 = vpop.f32.mrb[0].mxu0
        %v1506 = vadd.f32 0.0, %v1505
        %v1507 = vpop.f32.mrb[0].mxu0
        %1508 = vmatprep.mubr.f32.mxu0 0.0
        %1509 = vmatmul.mubr.f32.gmra.mrb[0].mxu0 %v1297
        %v1510 = vpop.f32.mrb[0].mxu0
        %v1511 = vadd.f32 0.0, %v1510
        %v1512 = vpop.f32.mrb[0].mxu0
        %1513 = vmatprep.mubr.f32.mxu0 0.0
        %1514 = vmatmul.mubr.f32.gmra.mrb[0].mxu0 %v1300
        %v1515 = vpop.f32.mrb[0].mxu0
        %v1516 = vadd.f32 0.0, %v1515
        %v1517 = vpop.f32.mrb[0].mxu0
        %1518 = vmatprep.mubr.f32.mxu0 0.0
        %1519 = vmatmul.mubr.f32.gmra.mrb[0].mxu0 %v1303
        %v1520 = vpop.f32.mrb[0].mxu0
        %v1521 = vadd.f32 0.0, %v1520
        %v1522 = vpop.f32.mrb[0].mxu0
        %1523 = vmatprep.mubr.f32.mxu0 0.0
        %1524 = vmatmul.mubr.f32.gmra.mrb[0].mxu0 %v1306
        %v1525 = vpop.f32.mrb[0].mxu0
        %v1526 = vadd.f32 0.0, %v1525
        %v1527 = vpop.f32.mrb[0].mxu0
        %1528 = vmatprep.mubr.f32.mxu0 0.0
        %1529 = vmatmul.mubr.f32.gmra.mrb[0].mxu0 %v1309
        %v1530 = vpop.f32.mrb[0].mxu0
        %v1531 = vadd.f32 0.0, %v1530
        %v1532 = vpop.f32.mrb[0].mxu0
        %1533 = vmatprep.mubr.f32.mxu0 0.0
        %1534 = vmatmul.mubr.f32.gmra.mrb[0].mxu0 %v1312
        %v1535 = vpop.f32.mrb[0].mxu0
        %v1536 = vadd.f32 0.0, %v1535
        %v1537 = vpop.f32.mrb[0].mxu0
        %1538 = vdwg.mxu0
        %v1539 = vmul.f32 %v1151, %v1381
        %v1540 = vmul.f32 %v1152, %v1386
        %v1541 = vmul.f32 %v1153, %v1391
        %v1542 = vmul.f32 %v1154, %v1396
        %v1543 = vmul.f32 %v1155, %v1401
        %v1544 = vmul.f32 %v1156, %v1406
        %v1545 = vmul.f32 %v1157, %v1411
        %v1546 = vmul.f32 %v1158, %v1416
        %v1547 = vmul.f32 %v1159, %v1421
        %v1548 = vmul.f32 %v1160, %v1426
        %v1549 = vmul.f32 %v1161, %v1431
        %v1550 = vmul.f32 %v1162, %v1436
        %v1551 = vmul.f32 %v1163, %v1441
        %v1552 = vmul.f32 %v1164, %v1446
        %v1553 = vmul.f32 %v1165, %v1451
        %v1554 = vmul.f32 %v1166, %v1456
        %v1555 = vmul.f32 %v1167, %v1461
        %v1556 = vmul.f32 %v1168, %v1466
        %v1557 = vmul.f32 %v1169, %v1471
        %v1558 = vmul.f32 %v1170, %v1476
        %v1559 = vmul.f32 %v1171, %v1481
        %v1560 = vmul.f32 %v1172, %v1486
        %v1561 = vmul.f32 %v1173, %v1491
        %v1562 = vmul.f32 %v1174, %v1496
        %v1563 = vmul.f32 %v1175, %v1501
        %v1564 = vmul.f32 %v1176, %v1506
        %v1565 = vmul.f32 %v1177, %v1511
        %v1566 = vmul.f32 %v1178, %v1516
        %v1567 = vmul.f32 %v1179, %v1521
        %v1568 = vmul.f32 %v1180, %v1526
        %v1569 = vmul.f32 %v1181, %v1531
        %v1570 = vmul.f32 %v1182, %v1536
        %1571 = vst [vmem:[%s323] sm:$0xff] %v1539
        %1572 = vst [vmem:[%s323 + $0x8] sm:$0xff] %v1540
        %1573 = vst [vmem:[%s323 + $0x10] sm:$0xff] %v1541
        %1574 = vst [vmem:[%s323 + $0x18] sm:$0xff] %v1542
        %1575 = vst [vmem:[%s323 + $0x20] sm:$0xff] %v1543
        %1576 = vst [vmem:[%s323 + $0x28] sm:$0xff] %v1544
        %1577 = vst [vmem:[%s323 + $0x30] sm:$0xff] %v1545
        %1578 = vst [vmem:[%s323 + $0x38] sm:$0xff] %v1546
        %1579 = vst [vmem:[%s323 + $0x40] sm:$0xff] %v1547
        %1580 = vst [vmem:[%s323 + $0x48] sm:$0xff] %v1548
        %1581 = vst [vmem:[%s323 + $0x50] sm:$0xff] %v1549
        %1582 = vst [vmem:[%s323 + $0x58] sm:$0xff] %v1550
        %1583 = vst [vmem:[%s323 + $0x60] sm:$0xff] %v1551
        %1584 = vst [vmem:[%s323 + $0x68] sm:$0xff] %v1552
        %1585 = vst [vmem:[%s323 + $0x70] sm:$0xff] %v1553
        %1586 = vst [vmem:[%s323 + $0x78] sm:$0xff] %v1554
        %1587 = vst [vmem:[%s323 + $0x80] sm:$0xff] %v1555
        %1588 = vst [vmem:[%s323 + $0x88] sm:$0xff] %v1556
        %1589 = vst [vmem:[%s323 + $0x90] sm:$0xff] %v1557
        %1590 = vst [vmem:[%s323 + $0x98] sm:$0xff] %v1558
        %1591 = vst [vmem:[%s323 + $0xa0] sm:$0xff] %v1559
        %1592 = vst [vmem:[%s323 + $0xa8] sm:$0xff] %v1560
        %1593 = vst [vmem:[%s323 + $0xb0] sm:$0xff] %v1561
        %1594 = vst [vmem:[%s323 + $0xb8] sm:$0xff] %v1562
        %1595 = vst [vmem:[%s323 + $0xc0] sm:$0xff] %v1563
        %1596 = vst [vmem:[%s323 + $0xc8] sm:$0xff] %v1564
        %1597 = vst [vmem:[%s323 + $0xd0] sm:$0xff] %v1565
        %1598 = vst [vmem:[%s323 + $0xd8] sm:$0xff] %v1566
        %1599 = vst [vmem:[%s323 + $0xe0] sm:$0xff] %v1567
        %1600 = vst [vmem:[%s323 + $0xe8] sm:$0xff] %v1568
        %1601 = vst [vmem:[%s323 + $0xf0] sm:$0xff] %v1569
        %1602 = vst [vmem:[%s323 + $0xf8] sm:$0xff] %v1570
        %s1603 = sand.u32 %s149, 1
        %s1604 = scalar_lea.sflag [#allocation4], %s1603
        %s1605 = sand.u32 %s149, 1
        %s1606 = smul.addr %s1605, 256
        %s1607 = scalar_lea.vmem [#allocation11], %s1606
        // Predicated region
        $region61: #{tpu_custom_call.1} parent=39 // pred_check
          %p1608 = pneg %p159
        $region62: #{tpu_custom_call.1} parent=39 // pred_check_branch
          %1610 = sbr.rel (%p1608) target = $region64
        $region63: #{tpu_custom_call.1} parent=39 // pred_region
          %s1611 = smul.u32 32, %s26
          %s1613 = ssub.s32 4096, 4096
          %1614 = vsyncadd %s1604, %s1613
          %s1615 = smul.addr %s1611, 128
          %s1616 = scalar_lea.hbm %s5, %s1615
          %s1617 = sshll.u32 %s1607, 4
          %s1618 = int_to_ptr.vmem [resolvable:$true] %s1617
          %1623 = dma.vmem_to_hbm [thread:$0]  %s1618, 4096, %s1616, %s1604, 128, 128, 8
        $region64: #{tpu_custom_call.1} parent=39 // pred_fallthru
          _
      $region40: #{tpu_custom_call.1} parent=5 // pred_fallthru
        _
      %p1624 = scmp.le.s32.totalorder 2, %s21
      // Predicated region
      $region65: #{tpu_custom_call.1} parent=5 // pred_check
        %p1625 = pneg %p1624
      $region66: #{tpu_custom_call.1} parent=5 // pred_check_branch
        %1627 = sbr.rel (%p1625) target = $region68
      $region67: #{tpu_custom_call.1} parent=5 // pred_region
        %s1628 = ssub.s32 %s21, 2
        // Predicated region
        $region69: #{tpu_custom_call.1} parent=67 // pred_check
          %p1629 = pneg %p165
        $region70: #{tpu_custom_call.1} parent=67 // pred_check_branch
          %1631 = sbr.rel (%p1629) target = $region72
        $region71: #{tpu_custom_call.1} parent=67 // pred_region
          %s1632 = sand.u32 %s150, 1
          %s1633 = scalar_lea.sflag [#allocation4], %s1632
          %s1634 = sand.u32 %s150, 1
          %s1635 = smul.addr %s1634, 256
          %s1636 = scalar_lea.vmem [#allocation11], %s1635
          %1637 = dma.done %s1633, 4096
        $region72: #{tpu_custom_call.1} parent=67 // pred_fallthru
          _
      $region68: #{tpu_custom_call.1} parent=5 // pred_fallthru
        _
    $region6: #{tpu_custom_call.1} parent=1 // loop_footer
      %s25 = sadd.s32 1, %s21
    $region7: #{tpu_custom_call.1} parent=1 // loop_footer_branch
      %20 = sbr.rel target = $region3
    $region8: #{tpu_custom_call.1} parent=1 // loop_exit
      _
    %1638 = vsyncpa [#allocation3], 1
    %s1639 = scalar_lea.sflag [#allocation3], 1
    %1640 = vsyncpa %s1639, 1
    %1641 = vsyncpa [#allocation6], 1
    %s1642 = scalar_lea.sflag [#allocation6], 1
    %1643 = vsyncpa %s1642, 1
    %1644 = vsyncpa [#allocation9], 1
    %1645 = vsyncpa [#allocation4], 1
    %s1646 = scalar_lea.sflag [#allocation4], 1
    %1647 = vsyncpa %s1646, 1

</llo_original>
